<compile_context>
chip_gen: v7x
topology: tpu7x:2x2x1
jax: 0.10.0
libtpu: 0.0.40
codegen_flags: <defaults>
</compile_context>

<pallas_src>
import jax
import jax.numpy as jnp
from jax.experimental import pallas as pl
from jax.experimental.pallas import tpu as pltpu

_LANE = 128
_SUBLANE = 8


def _round_up(x, m):
    return ((x + m - 1) // m) * m


def _default_tile_b():
    # v6e/v7x MXUs are 256x256 -> 256-row LHS tiles fill them; v5e is 128x128.
    try:
        kind = jax.devices()[0].device_kind.lower()
    except Exception:
        return 256
    return 128 if "v5" in kind else 256


def _pick_tile_h(hidden):
    for cand in (512, 256, 128):
        if hidden % cand == 0:
            return cand
    return hidden   # odd hidden size: fall back to un-tiled (module fixes H=2048)


def _vmem_limit_bytes(tile_b, d, tile_h, o_pad):
    # Double-buffered pipelined operands + resident output block, plus headroom
    # for the (tile_b, tile_h) f32 intermediate and compiler scratch.
    x_buf = 2 * tile_b * d * 4
    w1_buf = 2 * d * tile_h * 2
    b1_buf = 2 * _SUBLANE * tile_h * 4
    w2_buf = 2 * tile_h * o_pad * 2
    b2_buf = 2 * _SUBLANE * o_pad * 4
    out_buf = 2 * tile_b * o_pad * 4
    h_tmp = tile_b * tile_h * 4
    total = x_buf + w1_buf + b1_buf + w2_buf + b2_buf + out_buf + h_tmp
    return int(min(max(2 * total + (4 << 20), 16 << 20), 64 << 20))


def _mlp_kernel(x_ref, w1_ref, b1_ref, w2_ref, b2_ref, o_ref):
    k = pl.program_id(1)
    # fc1 chunk on the MXU: bf16 operands (x cast in-kernel), f32 accumulation.
    h = jnp.dot(x_ref[...].astype(jnp.bfloat16), w1_ref[...],
                preferred_element_type=jnp.float32)
    # Bias + ReLU in f32 on the VPU (v5e has no bf16 elementwise support).
    h = jnp.maximum(h + b1_ref[...], 0.0)
    # fc2 partial product for this hidden chunk.
    y = jnp.dot(h.astype(jnp.bfloat16), w2_ref[...],
                preferred_element_type=jnp.float32)

    @pl.when(k == 0)
    def _init():
        o_ref[...] = y + b2_ref[...]        # init accumulator, fold fc2 bias

    @pl.when(k != 0)
    def _accum():
        o_ref[...] += y


def prepare_b1e_params(w1, b1, w2, b2):
    """One-time packing of the Linear weights for the Pallas kernel.

    Hoisted out of the forward so the f32->bf16 casts and the lane padding of
    W2/b2 are not re-executed (and the weights not re-read from HBM) on every
    call.  Returns (w1_bf16, b1_f32[1,H], w2_bf16[H,O_pad], b2_f32[1,O_pad], O).
    """
    d, hidden = w1.shape
    out_dim = w2.shape[1]
    o_pad = _round_up(max(out_dim, _LANE), _LANE)

    w1_b = w1.astype(jnp.bfloat16)
    b1_2d = b1.astype(jnp.float32).reshape(1, hidden)
    if o_pad == out_dim:
        w2_p = w2.astype(jnp.bfloat16)
        b2_p = b2.astype(jnp.float32).reshape(1, out_dim)
    else:
        w2_p = jnp.zeros((hidden, o_pad), jnp.bfloat16).at[:, :out_dim].set(
            w2.astype(jnp.bfloat16))
        b2_p = jnp.zeros((1, o_pad), jnp.float32).at[:, :out_dim].set(
            b2.astype(jnp.float32).reshape(1, out_dim))
    return (w1_b, b1_2d, w2_p, b2_p, out_dim)


def b1e_pred_forward(x, params, *, tile_b=None, tile_h=None):
    """Pallas implementation of B1EPredModel.forward: relu(x@W1+b1)@W2+b2.

    `params` must come from `prepare_b1e_params` (weights pre-cast / padded
    once).  x has shape (..., embedding_dim) and is squeezed like torch's
    x.squeeze().
    """
    w1_b, b1_2d, w2_p, b2_p, out_dim = params
    orig_dtype = x.dtype

    x = jnp.squeeze(x)           # matches torch x.squeeze() (drops size-1 dims)
    single = (x.ndim == 1)       # single-sample case after squeeze
    if single:
        x = x[None, :]
    # TODO(synk): the 0-d result of squeeze (batch==1 AND embedding_dim==1) is
    #             not handled.

    B, D = x.shape
    H = w1_b.shape[1]
    O_pad = w2_p.shape[1]

    if tile_b is None:
        tile_b = _default_tile_b()
    if tile_h is None:
        tile_h = _pick_tile_h(H)

    # Batch tiling:
    #  * B < tile_b: one tile covering the sublane-rounded batch (pads <= 7
    #    rows).  Keeps a weight-DMA-bound small-batch problem on one TC.
    #  * B >= tile_b: x is passed unpadded; the ragged last block's OOB rows
    #    are unspecified but only feed output rows that Pallas discards.
    B_eff = B
    if B < tile_b:
        B_eff = _round_up(max(B, _SUBLANE), _SUBLANE)
        if B_eff != B:
            x = jnp.zeros((B_eff, D), x.dtype).at[:B, :].set(x)
        tile_b = B_eff
    grid_b = pl.cdiv(B_eff, tile_b)
    grid_h = pl.cdiv(H, tile_h)

    flops = 2 * grid_b * tile_b * (D * H + H * O_pad)
    bytes_accessed = (B_eff * D * x.dtype.itemsize
                      + grid_b * (D * H + H * O_pad) * 2   # bf16 weights / batch tile
                      + (H + O_pad) * 4
                      + B_eff * O_pad * 4)

    out = pl.pallas_call(
        _mlp_kernel,
        out_shape=jax.ShapeDtypeStruct((B_eff, O_pad), jnp.float32),
        grid_spec=pltpu.PrefetchScalarGridSpec(
            num_scalar_prefetch=0,
            grid=(grid_b, grid_h),
            in_specs=[
                pl.BlockSpec((tile_b, D), lambda i, k: (i, 0)),      # x tile
                pl.BlockSpec((D, tile_h), lambda i, k: (0, k)),      # W1 col chunk
                pl.BlockSpec((1, tile_h), lambda i, k: (0, k)),      # b1 chunk
                pl.BlockSpec((tile_h, O_pad), lambda i, k: (k, 0)),  # W2 row chunk
                pl.BlockSpec((1, O_pad), lambda i, k: (0, 0)),       # b2
            ],
            out_specs=pl.BlockSpec((tile_b, O_pad), lambda i, k: (i, 0)),
        ),
        compiler_params=pltpu.CompilerParams(
            dimension_semantics=("parallel", "arbitrary"),
            vmem_limit_bytes=_vmem_limit_bytes(tile_b, D, tile_h, O_pad)),
        cost_estimate=pl.CostEstimate(
            flops=flops, transcendentals=0, bytes_accessed=bytes_accessed),
    )(x, w1_b, b1_2d, w2_p, b2_p)

    out = out[:B, :out_dim].astype(orig_dtype)
    if single:
        out = out[0]
    return out


def _init_params(key, embedding_dim, hidden, output_dim, dtype=jnp.float32):
    # Deterministic init mimicking torch.nn.Linear default (uniform ±1/sqrt(fan_in)).
    k1, k2, k3, k4 = jax.random.split(key, 4)
    lim1 = 1.0 / jnp.sqrt(embedding_dim)
    lim2 = 1.0 / jnp.sqrt(hidden)
    w1 = jax.random.uniform(k1, (embedding_dim, hidden), dtype, -lim1, lim1)
    b1 = jax.random.uniform(k2, (hidden,), dtype, -lim1, lim1)
    w2 = jax.random.uniform(k3, (hidden, output_dim), dtype, -lim2, lim2)
    b2 = jax.random.uniform(k4, (output_dim,), dtype, -lim2, lim2)
    return w1, b1, w2, b2


if __name__ == "__main__":
    # Hidden layer is fixed at 2048 by the module definition.  batch=200 is not
    # a multiple of 128 (exercises the ragged / single-tile paths depending on
    # chip generation); output_dim=16 exercises the lane-padding path; the
    # singleton dim in x exercises x.squeeze().
    batch = 200
    embedding_dim = 256
    hidden = 2048
    output_dim = 16

    key = jax.random.PRNGKey(0)
    kx, kp = jax.random.split(key)
    x = jax.random.normal(kx, (batch, 1, embedding_dim), dtype=jnp.float32)
    w1, b1, w2, b2 = _init_params(kp, embedding_dim, hidden, output_dim)

    params = prepare_b1e_params(w1, b1, w2, b2)   # one-time weight packing
    out = b1e_pred_forward(x, params)
    out = jax.block_until_ready(out)

    # Reference with the same bf16-operand / f32-accumulate numerics.
    xs = jnp.squeeze(x)
    h_ref = jnp.maximum(
        jnp.dot(xs.astype(jnp.bfloat16), w1.astype(jnp.bfloat16),
                preferred_element_type=jnp.float32) + b1, 0.0)
    ref = jnp.dot(h_ref.astype(jnp.bfloat16), w2.astype(jnp.bfloat16),
                  preferred_element_type=jnp.float32) + b2

    assert out.shape == (batch, output_dim), out.shape
    max_err = float(jnp.max(jnp.abs(out - ref)))
    assert jnp.allclose(out, ref, atol=2e-2, rtol=2e-2), max_err

    # Sanity vs. full-f32 math (looser tolerance for bf16 operand rounding).
    ref_f32 = jnp.maximum(xs @ w1 + b1, 0.0) @ w2 + b2
    assert jnp.allclose(out, ref_f32, atol=1e-1, rtol=1e-1)

    print("KERNEL_OK")
</pallas_src>

<mosaic_0001>
module attributes {stable_mosaic.version = 11 : i64} {
  func.func @_mlp_kernel(%arg0: i32, %arg1: i32, %arg2: memref<200x256xf32, #tpu.memory_space<vmem>>, %arg3: memref<256x512xbf16, #tpu.memory_space<vmem>>, %arg4: memref<1x512xf32, #tpu.memory_space<vmem>>, %arg5: memref<512x128xbf16, #tpu.memory_space<vmem>>, %arg6: memref<1x128xf32, #tpu.memory_space<vmem>>, %arg7: memref<200x128xf32, #tpu.memory_space<vmem>>) attributes {dimension_semantics = [#tpu.dimension_semantics<parallel>, #tpu.dimension_semantics<arbitrary>], iteration_bounds = array<i64: 1, 4>, scalar_prefetch = 0 : i64, scratch_operands = 0 : i64, tpu.core_type = #tpu.core_type<tc>, window_params = [{transform_indices = @transform_0, window_bounds = array<i64: 200, 256>}, {transform_indices = @transform_1, window_bounds = array<i64: 256, 512>}, {transform_indices = @transform_2, window_bounds = array<i64: 1, 512>}, {transform_indices = @transform_3, window_bounds = array<i64: 512, 128>}, {pipeline_mode = #tpu.pipeline_mode<synchronous>, transform_indices = @transform_4, window_bounds = array<i64: 1, 128>}, {transform_indices = @transform_5, window_bounds = array<i64: 200, 128>}]} {
    %c0 = arith.constant 0 : index
    %c0_0 = arith.constant 0 : index
    %0 = vector.load %arg2[%c0, %c0_0] : memref<200x256xf32, #tpu.memory_space<vmem>>, vector<200x256xf32>
    %1 = arith.truncf %0 : vector<200x256xf32> to vector<200x256xbf16>
    %c0_1 = arith.constant 0 : index
    %c0_2 = arith.constant 0 : index
    %2 = vector.load %arg3[%c0_1, %c0_2] : memref<256x512xbf16, #tpu.memory_space<vmem>>, vector<256x512xbf16>
    %cst = arith.constant dense<0.000000e+00> : vector<200x512xf32>
    %3 = tpu.matmul %1, %2, %cst {dimension_numbers = #tpu.dot_dimension_numbers<[1], [0], [0], [1], [0, 0, 1, 1], [], []>} : vector<200x256xbf16>, vector<256x512xbf16>, vector<200x512xf32> -> vector<200x512xf32>
    %c0_3 = arith.constant 0 : index
    %c0_4 = arith.constant 0 : index
    %4 = vector.load %arg4[%c0_3, %c0_4] : memref<1x512xf32, #tpu.memory_space<vmem>>, vector<1x512xf32>
    %5 = vector.broadcast %4 : vector<1x512xf32> to vector<200x512xf32>
    %6 = arith.addf %3, %5 : vector<200x512xf32>
    %cst_5 = arith.constant 0.000000e+00 : f32
    %7 = vector.broadcast %cst_5 : f32 to vector<200x512xf32>
    %8 = arith.maximumf %6, %7 : vector<200x512xf32>
    %9 = arith.truncf %8 : vector<200x512xf32> to vector<200x512xbf16>
    %c0_6 = arith.constant 0 : index
    %c0_7 = arith.constant 0 : index
    %10 = vector.load %arg5[%c0_6, %c0_7] : memref<512x128xbf16, #tpu.memory_space<vmem>>, vector<512x128xbf16>
    %cst_8 = arith.constant dense<0.000000e+00> : vector<200x128xf32>
    %11 = tpu.matmul %9, %10, %cst_8 {dimension_numbers = #tpu.dot_dimension_numbers<[1], [0], [0], [1], [0, 0, 1, 1], [], []>} : vector<200x512xbf16>, vector<512x128xbf16>, vector<200x128xf32> -> vector<200x128xf32>
    %c0_i32 = arith.constant 0 : i32
    %12 = arith.cmpi eq, %arg1, %c0_i32 : i32
    %13 = arith.extui %12 : i1 to i32
    %c0_i32_9 = arith.constant 0 : i32
    %14 = arith.cmpi ne, %13, %c0_i32_9 : i32
    scf.if %14 {
      %c0_12 = arith.constant 0 : index
      %c0_13 = arith.constant 0 : index
      %18 = vector.load %arg6[%c0_12, %c0_13] : memref<1x128xf32, #tpu.memory_space<vmem>>, vector<1x128xf32>
      %19 = vector.broadcast %18 : vector<1x128xf32> to vector<200x128xf32>
      %20 = arith.addf %11, %19 : vector<200x128xf32>
      %c0_14 = arith.constant 0 : index
      %c0_15 = arith.constant 0 : index
      %21 = vector.load %arg7[%c0_14, %c0_15] : memref<200x128xf32, #tpu.memory_space<vmem>>, vector<200x128xf32>
      tpu.vector_store %arg7[%c0_14, %c0_15], %20 {strides = array<i32>} : memref<200x128xf32, #tpu.memory_space<vmem>>, vector<200x128xf32>,
    } else {
    }
    %c0_i32_10 = arith.constant 0 : i32
    %15 = arith.cmpi ne, %arg1, %c0_i32_10 : i32
    %16 = arith.extui %15 : i1 to i32
    %c0_i32_11 = arith.constant 0 : i32
    %17 = arith.cmpi ne, %16, %c0_i32_11 : i32
    scf.if %17 {
      %c0_12 = arith.constant 0 : index
      %c0_13 = arith.constant 0 : index
      %18 = vector.load %arg7[%c0_12, %c0_13] : memref<200x128xf32, #tpu.memory_space<vmem>>, vector<200x128xf32>
      %19 = arith.addf %18, %11 : vector<200x128xf32>
      %c0_14 = arith.constant 0 : index
      %c0_15 = arith.constant 0 : index
      %20 = vector.load %arg7[%c0_14, %c0_15] : memref<200x128xf32, #tpu.memory_space<vmem>>, vector<200x128xf32>
      tpu.vector_store %arg7[%c0_14, %c0_15], %19 {strides = array<i32>} : memref<200x128xf32, #tpu.memory_space<vmem>>, vector<200x128xf32>,
    } else {
    }
    return
  }
  func.func @transform_0(%arg0: i32, %arg1: i32) -> (i32, i32) {
    %c0_i32 = arith.constant 0 : i32
    %c0_i32_0 = arith.constant 0 : i32
    return %arg0, %c0_i32 : i32, i32
  }
  func.func @transform_1(%arg0: i32, %arg1: i32) -> (i32, i32) {
    %c0_i32 = arith.constant 0 : i32
    %c0_i32_0 = arith.constant 0 : i32
    return %c0_i32, %arg1 : i32, i32
  }
  func.func @transform_2(%arg0: i32, %arg1: i32) -> (i32, i32) {
    %c0_i32 = arith.constant 0 : i32
    %c0_i32_0 = arith.constant 0 : i32
    return %c0_i32, %arg1 : i32, i32
  }
  func.func @transform_3(%arg0: i32, %arg1: i32) -> (i32, i32) {
    %c0_i32 = arith.constant 0 : i32
    %c0_i32_0 = arith.constant 0 : i32
    return %arg1, %c0_i32 : i32, i32
  }
  func.func @transform_4(%arg0: i32, %arg1: i32) -> (i32, i32) {
    %c0_i32 = arith.constant 0 : i32
    %c0_i32_0 = arith.constant 0 : i32
    %c0_i32_1 = arith.constant 0 : i32
    return %c0_i32, %c0_i32_0 : i32, i32
  }
  func.func @transform_5(%arg0: i32, %arg1: i32) -> (i32, i32) {
    %c0_i32 = arith.constant 0 : i32
    %c0_i32_0 = arith.constant 0 : i32
    return %arg0, %c0_i32 : i32, i32
  }
}

</mosaic_0001>

<llo_original>
// kernel: tpu_custom_call.1
$region0: #{tpu_custom_call.1}
  #allocation0 [shape = 'u32[]', space=smem, size = 0x4, offset = 0x4, fixed_abs, tag = 'smem constant byte address 0x4 - core index']
  #allocation1 [shape = 'u32[144,128]{1,0:T(1,128)}', space=vmem, size = 0x12000, scoped, tag = 'internal scratch']
  %s0 = inlined_call_operand.hbm [shape: f32[200,256], index: 0, kind: input, shape index: {}]
  %s1 = inlined_call_operand.hbm [shape: bf16[256,2048], index: 1, kind: input, shape index: {}]
  %s2 = inlined_call_operand.hbm [shape: f32[1,2048], index: 2, kind: input, shape index: {}]
  %s3 = inlined_call_operand.hbm [shape: bf16[2048,128], index: 3, kind: input, shape index: {}]
  %s4 = inlined_call_operand.vmem [shape: f32[1,128], index: 4, kind: input, shape index: {}]
  %s5 = inlined_call_operand.hbm [shape: f32[200,128], index: 5, kind: output, shape index: {}]
  %s6 = sld [smem:[#allocation0]]
  $region77: #{tpu_custom_call.1} parent=0
    _
  %s8 = ssub.s32 1, %s6
  %s9 = scalar_select 0, %s8, %s6
  $region1: #{tpu_custom_call.1} parent=0
    #allocation2 [shape = 'u8[204800]{0}', space=vmem, size = 0x32000, scoped, tag = 'input window, operand 0, single buffered']
    #allocation3 [shape = 's32[2]{0}', space=sflag, size = 0x8, scoped, tag = 'scoped memory for tpu_custom_call.1']
    #allocation4 [shape = 's32[2]{0}', space=sflag, size = 0x8, scoped, tag = 'scoped memory for tpu_custom_call.1']
    #allocation5 [shape = 'u8[524288]{0}', space=vmem, size = 0x80000, scoped, tag = 'input window, operand 1']
    #allocation6 [shape = 's32[2]{0}', space=sflag, size = 0x8, scoped, tag = 'scoped memory for tpu_custom_call.1']
    #allocation7 [shape = 'u8[4096]{0}', space=vmem, size = 0x1000, scoped, tag = 'input window, operand 2']
    #allocation8 [shape = 'u8[262144]{0}', space=vmem, size = 0x40000, scoped, tag = 'input window, operand 3']
    #allocation9 [shape = 's32[2]{0}', space=sflag, size = 0x8, scoped, tag = 'scoped memory for tpu_custom_call.1']
    #allocation10 [shape = 'u8[102400]{0}', space=vmem, size = 0x19000, scoped, tag = 'output window, operand 0, single buffered']
    %10 = vsyncpa [#allocation3], 0
    %11 = vsyncpa [#allocation6], 0
    %s12 = scalar_lea.sflag [#allocation6], 1
    %13 = vsyncpa %s12, 0
    %14 = vsyncpa [#allocation9], 0
    %s15 = scalar_lea.sflag [#allocation9], 1
    %16 = vsyncpa %s15, 0
    %17 = vsyncpa [#allocation4], 0
    loop: start=0, step=1, limit=6
    $region2: #{tpu_custom_call.1} parent=1 // loop_pre_header
      _
    $region3: #{tpu_custom_call.1} parent=1 // loop_header
      %s19 = sphi 0, %s23
      %p20 = scmp.ge.s32.totalorder %s19, 6
      %s26 = sphi 0, %s38
      %s27 = sphi 0, %s34
      %s28 = sphi 0, %s26
      %s29 = sphi 0, %s27
      %s30 = sphi 0, %s28
      %s31 = sphi 0, %s29
      %s41 = sphi 0, %s43
      %s44 = sphi 0, %s41
      %s45 = sphi 0, %s44
      %s61 = sphi 0, %s45
      %s67 = sphi 0, %s69
      %s70 = sphi 0, %s67
      %s71 = sphi 0, %s70
      %s87 = sphi 0, %s71
      %s93 = sphi 0, %s95
      %s96 = sphi 0, %s93
      %s97 = sphi 0, %s96
      %s113 = sphi 0, %s97
      %s119 = sphi 0, %s121
      %s122 = sphi 0, %s119
      %s123 = sphi 0, %s122
      %s139 = sphi 0, %s123
      %s143 = sphi 0, %s143
      %s145 = sphi 0, %s143
      %s146 = sphi 0, %s145
      %s160 = sphi 0, %s146
      %s166 = sphi 0, %s168
      %s169 = sphi 0, %s166
      %s170 = sphi 0, %s169
      %s186 = sphi 0, %s170
    $region4: #{tpu_custom_call.1} parent=1 // loop_header_branch
      %22 = sbr.rel (%p20) target = $region8
    $region5: #{tpu_custom_call.1} parent=1 // loop_body
      %s24 = ssub.s32 %s19, 1
      %s25 = ssub.s32 %s19, 2
      %s32 = sadd.s32 1, %s27
      %p33 = scmp.ge.s32.totalorder %s32, 4
      %s34 = scalar_select %p33, 0, %s32
      %s35 = sadd.s32 1, %s26
      %s36 = scalar_select %p33, %s35, %s26
      %p37 = scmp.ge.s32.totalorder %s36, 1
      %s38 = scalar_select %p37, 0, %s36
      %s39 = ssub.s32 %s26, %s38
      %p40 = scmp.eq.s32.totalorder %s39, 0
      %s42 = sadd.s32 %s41, 1
      %s43 = scalar_select %p40, %s41, %s42
      %p46 = pneg %p40
      %p47 = scmp.eq.s32.totalorder %s19, 3
      %p48 = por %p46, %p47
      %p49 = scmp.ne.s32.totalorder %s41, %s44
      %p50 = scmp.eq.s32.totalorder %s19, 0
      %p51 = por %p49, %p50
      %p52 = scmp.ne.s32.totalorder %s41, %s44
      %p53 = scmp.eq.s32.totalorder %s24, 3
      %p54 = por %p52, %p53
      %p55 = scmp.ne.s32.totalorder %s44, %s45
      %p56 = scmp.eq.s32.totalorder %s24, 0
      %p57 = por %p55, %p56
      %p58 = scmp.ne.s32.totalorder %s44, %s45
      %p59 = scmp.eq.s32.totalorder %s25, 3
      %p60 = por %p58, %p59
      %p62 = scmp.ne.s32.totalorder %s45, %s61
      %p63 = scmp.eq.s32.totalorder %s25, 0
      %p64 = por %p62, %p63
      %s65 = ssub.s32 %s27, %s34
      %p66 = scmp.eq.s32.totalorder %s65, 0
      %s68 = sadd.s32 %s67, 1
      %s69 = scalar_select %p66, %s67, %s68
      %p72 = pneg %p66
      %p73 = scmp.eq.s32.totalorder %s19, 3
      %p74 = por %p72, %p73
      %p75 = scmp.ne.s32.totalorder %s67, %s70
      %p76 = scmp.eq.s32.totalorder %s19, 0
      %p77 = por %p75, %p76
      %p78 = scmp.ne.s32.totalorder %s67, %s70
      %p79 = scmp.eq.s32.totalorder %s24, 3
      %p80 = por %p78, %p79
      %p81 = scmp.ne.s32.totalorder %s70, %s71
      %p82 = scmp.eq.s32.totalorder %s24, 0
      %p83 = por %p81, %p82
      %p84 = scmp.ne.s32.totalorder %s70, %s71
      %p85 = scmp.eq.s32.totalorder %s25, 3
      %p86 = por %p84, %p85
      %p88 = scmp.ne.s32.totalorder %s71, %s87
      %p89 = scmp.eq.s32.totalorder %s25, 0
      %p90 = por %p88, %p89
      %s91 = ssub.s32 %s27, %s34
      %p92 = scmp.eq.s32.totalorder %s91, 0
      %s94 = sadd.s32 %s93, 1
      %s95 = scalar_select %p92, %s93, %s94
      %p98 = pneg %p92
      %p99 = scmp.eq.s32.totalorder %s19, 3
      %p100 = por %p98, %p99
      %p101 = scmp.ne.s32.totalorder %s93, %s96
      %p102 = scmp.eq.s32.totalorder %s19, 0
      %p103 = por %p101, %p102
      %p104 = scmp.ne.s32.totalorder %s93, %s96
      %p105 = scmp.eq.s32.totalorder %s24, 3
      %p106 = por %p104, %p105
      %p107 = scmp.ne.s32.totalorder %s96, %s97
      %p108 = scmp.eq.s32.totalorder %s24, 0
      %p109 = por %p107, %p108
      %p110 = scmp.ne.s32.totalorder %s96, %s97
      %p111 = scmp.eq.s32.totalorder %s25, 3
      %p112 = por %p110, %p111
      %p114 = scmp.ne.s32.totalorder %s97, %s113
      %p115 = scmp.eq.s32.totalorder %s25, 0
      %p116 = por %p114, %p115
      %s117 = ssub.s32 %s27, %s34
      %p118 = scmp.eq.s32.totalorder %s117, 0
      %s120 = sadd.s32 %s119, 1
      %s121 = scalar_select %p118, %s119, %s120
      %p124 = pneg %p118
      %p125 = scmp.eq.s32.totalorder %s19, 3
      %p126 = por %p124, %p125
      %p127 = scmp.ne.s32.totalorder %s119, %s122
      %p128 = scmp.eq.s32.totalorder %s19, 0
      %p129 = por %p127, %p128
      %p130 = scmp.ne.s32.totalorder %s119, %s122
      %p131 = scmp.eq.s32.totalorder %s24, 3
      %p132 = por %p130, %p131
      %p133 = scmp.ne.s32.totalorder %s122, %s123
      %p134 = scmp.eq.s32.totalorder %s24, 0
      %p135 = por %p133, %p134
      %p136 = scmp.ne.s32.totalorder %s122, %s123
      %p137 = scmp.eq.s32.totalorder %s25, 3
      %p138 = por %p136, %p137
      %p140 = scmp.ne.s32.totalorder %s123, %s139
      %p141 = scmp.eq.s32.totalorder %s25, 0
      %p142 = por %p140, %p141
      %s144 = sadd.s32 %s143, 1
      %p147 = scmp.eq.s32.totalorder %s19, 3
      %p148 = scmp.ne.s32.totalorder %s143, %s145
      %p149 = scmp.eq.s32.totalorder %s19, 0
      %p150 = por %p148, %p149
      %p151 = scmp.ne.s32.totalorder %s143, %s145
      %p152 = scmp.eq.s32.totalorder %s24, 3
      %p153 = por %p151, %p152
      %p154 = scmp.ne.s32.totalorder %s145, %s146
      %p155 = scmp.eq.s32.totalorder %s24, 0
      %p156 = por %p154, %p155
      %p157 = scmp.ne.s32.totalorder %s145, %s146
      %p158 = scmp.eq.s32.totalorder %s25, 3
      %p159 = por %p157, %p158
      %p161 = scmp.ne.s32.totalorder %s146, %s160
      %p162 = scmp.eq.s32.totalorder %s25, 0
      %p163 = por %p161, %p162
      %s164 = ssub.s32 %s26, %s38
      %p165 = scmp.eq.s32.totalorder %s164, 0
      %s167 = sadd.s32 %s166, 1
      %s168 = scalar_select %p165, %s166, %s167
      %p171 = pneg %p165
      %p172 = scmp.eq.s32.totalorder %s19, 3
      %p173 = por %p171, %p172
      %p174 = scmp.ne.s32.totalorder %s166, %s169
      %p175 = scmp.eq.s32.totalorder %s19, 0
      %p176 = por %p174, %p175
      %p177 = scmp.ne.s32.totalorder %s166, %s169
      %p178 = scmp.eq.s32.totalorder %s24, 3
      %p179 = por %p177, %p178
      %p180 = scmp.ne.s32.totalorder %s169, %s170
      %p181 = scmp.eq.s32.totalorder %s24, 0
      %p182 = por %p180, %p181
      %p183 = scmp.ne.s32.totalorder %s169, %s170
      %p184 = scmp.eq.s32.totalorder %s25, 3
      %p185 = por %p183, %p184
      %p187 = scmp.ne.s32.totalorder %s170, %s186
      %p188 = scmp.eq.s32.totalorder %s25, 0
      %p189 = por %p187, %p188
      %p190 = scmp.le.s32.totalorder 1, %s19
      %p191 = scmp.lt.s32.totalorder %s19, 5
      %p192 = pnand %p190, %p191
      %p193 = pneg %p192
      // Predicated region
      $region9: #{tpu_custom_call.1} parent=5 // pred_check
        _
      $region10: #{tpu_custom_call.1} parent=5 // pred_check_branch
        %195 = sbr.rel (%p192) target = $region12
      $region11: #{tpu_custom_call.1} parent=5 // pred_region
        %s196 = ssub.s32 %s19, 1
        // Predicated region
        $region13: #{tpu_custom_call.1} parent=11 // pred_check
          %p197 = pneg %p57
        $region14: #{tpu_custom_call.1} parent=11 // pred_check_branch
          %199 = sbr.rel (%p197) target = $region16
        $region15: #{tpu_custom_call.1} parent=11 // pred_region
          %s200 = smul.u32 25, %s28
          %s202 = ssub.s32 6400, 6400
          %203 = vsyncadd [#allocation3], %s202
          %s204 = smul.addr %s200, 2
          %s205 = smul.addr %s204, 128
          %s206 = scalar_lea.hbm %s0, %s205
          %s207 = sshll.u32 [#allocation2], 4
          %s208 = int_to_ptr.vmem [resolvable:$true] %s207
          %213 = dma.hbm_to_vmem [thread:$0]  %s206, 6400, %s208, [#allocation3], 256, 256, 16
        $region16: #{tpu_custom_call.1} parent=11 // pred_fallthru
          _
        // Predicated region
        $region17: #{tpu_custom_call.1} parent=11 // pred_check
          %p214 = pneg %p156
        $region18: #{tpu_custom_call.1} parent=11 // pred_check_branch
          %216 = sbr.rel (%p214) target = $region20
        $region19: #{tpu_custom_call.1} parent=11 // pred_region
          _
        $region20: #{tpu_custom_call.1} parent=11 // pred_fallthru
          _
      $region12: #{tpu_custom_call.1} parent=5 // pred_fallthru
        _
      %p217 = scmp.lt.s32.totalorder %s19, 4
      // Predicated region
      $region21: #{tpu_custom_call.1} parent=5 // pred_check
        %p218 = pneg %p217
      $region22: #{tpu_custom_call.1} parent=5 // pred_check_branch
        %220 = sbr.rel (%p218) target = $region24
      $region23: #{tpu_custom_call.1} parent=5 // pred_region
        // Predicated region
        $region25: #{tpu_custom_call.1} parent=23 // pred_check
          %p221 = pneg %p77
        $region26: #{tpu_custom_call.1} parent=23 // pred_check_branch
          %223 = sbr.rel (%p221) target = $region28
        $region27: #{tpu_custom_call.1} parent=23 // pred_region
          %s224 = sand.u32 %s19, 1
          %s225 = scalar_lea.sflag [#allocation6], %s224
          %s226 = sand.u32 %s67, 1
          %s227 = smul.addr %s226, 512
          %s228 = scalar_lea.vmem [#allocation5], %s227
          %s229 = smul.u32 4, %s27
          %s231 = ssub.s32 8192, 8192
          %232 = vsyncadd %s225, %s231
          %s233 = smul.addr %s229, 64
          %s234 = scalar_lea.hbm %s1, %s233
          %s235 = sshll.u32 %s228, 4
          %s236 = int_to_ptr.vmem [resolvable:$true] %s235
          %241 = dma.hbm_to_vmem [thread:$0]  %s234, 8192, %s236, %s225, 1024, 256, 16
        $region28: #{tpu_custom_call.1} parent=23 // pred_fallthru
          _
        // Predicated region
        $region29: #{tpu_custom_call.1} parent=23 // pred_check
          %p242 = pneg %p103
        $region30: #{tpu_custom_call.1} parent=23 // pred_check_branch
          %244 = sbr.rel (%p242) target = $region32
        $region31: #{tpu_custom_call.1} parent=23 // pred_region
          %s245 = sand.u32 %s19, 1
          %s246 = scalar_lea.sflag [#allocation6], %s245
          %s247 = sand.u32 %s93, 1
          %s248 = smul.addr %s247, 4
          %s249 = scalar_lea.vmem [#allocation7], %s248
          %s250 = smul.u32 4, %s27
          %s252 = ssub.s32 64, 64
          %253 = vsyncadd %s246, %s252
          %s254 = smul.addr %s250, 16
          %s255 = scalar_lea.hbm %s2, %s254
          %s257 = sshll.u32 %s249, 4
          %s258 = int_to_ptr.vmem [resolvable:$true] %s257
          %260 = dma.hbm_to_vmem [thread:$0]  %s255, 64, %s258, %s246
        $region32: #{tpu_custom_call.1} parent=23 // pred_fallthru
          _
        // Predicated region
        $region33: #{tpu_custom_call.1} parent=23 // pred_check
          %p261 = pneg %p129
        $region34: #{tpu_custom_call.1} parent=23 // pred_check_branch
          %263 = sbr.rel (%p261) target = $region36
        $region35: #{tpu_custom_call.1} parent=23 // pred_region
          %s264 = sand.u32 %s119, 1
          %s265 = scalar_lea.sflag [#allocation9], %s264
          %s266 = sand.u32 %s119, 1
          %s267 = smul.addr %s266, 256
          %s268 = scalar_lea.vmem [#allocation8], %s267
          %s269 = smul.u32 64, %s27
          %s271 = ssub.s32 4096, 4096
          %272 = vsyncadd %s265, %s271
          %s273 = smul.addr %s269, 64
          %s274 = scalar_lea.hbm %s3, %s273
          %s275 = sshll.u32 %s268, 4
          %s276 = int_to_ptr.vmem [resolvable:$true] %s275
          %281 = dma.hbm_to_vmem [thread:$0]  %s274, 4096, %s276, %s265, 64, 64, 4
        $region36: #{tpu_custom_call.1} parent=23 // pred_fallthru
          _
      $region24: #{tpu_custom_call.1} parent=5 // pred_fallthru
        _
      %p282 = scmp.le.s32.totalorder 1, %s19
      %p283 = scmp.lt.s32.totalorder %s19, 5
      %p284 = pnand %p282, %p283
      %p285 = pneg %p284
      // Predicated region
      $region37: #{tpu_custom_call.1} parent=5 // pred_check
        _
      $region38: #{tpu_custom_call.1} parent=5 // pred_check_branch
        %287 = sbr.rel (%p284) target = $region40
      $region39: #{tpu_custom_call.1} parent=5 // pred_region
        %s288 = ssub.s32 %s19, 1
        // Predicated region
        $region41: #{tpu_custom_call.1} parent=39 // pred_check
          %p289 = pneg %p57
        $region42: #{tpu_custom_call.1} parent=39 // pred_check_branch
          %291 = sbr.rel (%p289) target = $region44
        $region43: #{tpu_custom_call.1} parent=39 // pred_region
          %292 = dma.done [#allocation3], 6400
        $region44: #{tpu_custom_call.1} parent=39 // pred_fallthru
          _
        %s293 = sand.u32 %s24, 1
        %s294 = scalar_lea.sflag [#allocation6], %s293
        %s295 = sand.u32 %s70, 1
        %s296 = smul.addr %s295, 512
        %s297 = scalar_lea.vmem [#allocation5], %s296
        // Predicated region
        $region45: #{tpu_custom_call.1} parent=39 // pred_check
          %p298 = pneg %p83
        $region46: #{tpu_custom_call.1} parent=39 // pred_check_branch
          %300 = sbr.rel (%p298) target = $region48
        $region47: #{tpu_custom_call.1} parent=39 // pred_region
          %301 = dma.done %s294, 8192
        $region48: #{tpu_custom_call.1} parent=39 // pred_fallthru
          _
        %s302 = sand.u32 %s24, 1
        %s303 = scalar_lea.sflag [#allocation6], %s302
        %s304 = sand.u32 %s96, 1
        %s305 = smul.addr %s304, 4
        %s306 = scalar_lea.vmem [#allocation7], %s305
        // Predicated region
        $region49: #{tpu_custom_call.1} parent=39 // pred_check
          %p307 = pneg %p109
        $region50: #{tpu_custom_call.1} parent=39 // pred_check_branch
          %309 = sbr.rel (%p307) target = $region52
        $region51: #{tpu_custom_call.1} parent=39 // pred_region
          %310 = dma.done %s303, 64
        $region52: #{tpu_custom_call.1} parent=39 // pred_fallthru
          _
        %s311 = sand.u32 %s122, 1
        %s312 = scalar_lea.sflag [#allocation9], %s311
        %s313 = sand.u32 %s122, 1
        %s314 = smul.addr %s313, 256
        %s315 = scalar_lea.vmem [#allocation8], %s314
        // Predicated region
        $region53: #{tpu_custom_call.1} parent=39 // pred_check
          %p316 = pneg %p135
        $region54: #{tpu_custom_call.1} parent=39 // pred_check_branch
          %318 = sbr.rel (%p316) target = $region56
        $region55: #{tpu_custom_call.1} parent=39 // pred_region
          %319 = dma.done %s312, 4096
        $region56: #{tpu_custom_call.1} parent=39 // pred_fallthru
          _
        %p320 = pneg %p57
        %p321 = pneg %p54
        %s322 = sand.u32 %s24, 1
        %s323 = scalar_lea.sflag [#allocation6], %s322
        %s324 = sand.u32 %s70, 1
        %s325 = smul.addr %s324, 512
        %s326 = scalar_lea.vmem [#allocation5], %s325
        %p327 = pneg %p83
        %p328 = pneg %p80
        %s329 = sand.u32 %s24, 1
        %s330 = scalar_lea.sflag [#allocation6], %s329
        %s331 = sand.u32 %s96, 1
        %s332 = smul.addr %s331, 4
        %s333 = scalar_lea.vmem [#allocation7], %s332
        %p334 = pneg %p109
        %p335 = pneg %p106
        %s336 = sand.u32 %s122, 1
        %s337 = scalar_lea.sflag [#allocation9], %s336
        %s338 = sand.u32 %s122, 1
        %s339 = smul.addr %s338, 256
        %s340 = scalar_lea.vmem [#allocation8], %s339
        %p341 = pneg %p135
        %p342 = pneg %p132
        %p343 = pneg %p156
        %p344 = pneg %p153
        %p345 = pneg %p182
        %p346 = pneg %p179
        %s347 = smul.u32 25, %s28
        %s348 = smul.u32 4, %s29
        %s349 = smul.u32 4, %s29
        %s350 = smul.u32 64, %s29
        %s351 = smul.u32 25, %s28
        %v353 = vld [vmem:[#allocation2] sm:$0xff]
        %v354 = vld [vmem:[#allocation2 + $0x8] sm:$0xff]
        %v355 = vld [vmem:[#allocation2 + $0x10] sm:$0xff]
        %v356 = vld [vmem:[#allocation2 + $0x18] sm:$0xff]
        %v357 = vld [vmem:[#allocation2 + $0x20] sm:$0xff]
        %v358 = vld [vmem:[#allocation2 + $0x28] sm:$0xff]
        %v359 = vld [vmem:[#allocation2 + $0x30] sm:$0xff]
        %v360 = vld [vmem:[#allocation2 + $0x38] sm:$0xff]
        %v361 = vld [vmem:[#allocation2 + $0x40] sm:$0xff]
        %v362 = vld [vmem:[#allocation2 + $0x48] sm:$0xff]
        %v363 = vld [vmem:[#allocation2 + $0x50] sm:$0xff]
        %v364 = vld [vmem:[#allocation2 + $0x58] sm:$0xff]
        %v365 = vld [vmem:[#allocation2 + $0x60] sm:$0xff]
        %v366 = vld [vmem:[#allocation2 + $0x68] sm:$0xff]
        %v367 = vld [vmem:[#allocation2 + $0x70] sm:$0xff]
        %v368 = vld [vmem:[#allocation2 + $0x78] sm:$0xff]
        %v369 = vld [vmem:[#allocation2 + $0x80] sm:$0xff]
        %v370 = vld [vmem:[#allocation2 + $0x88] sm:$0xff]
        %v371 = vld [vmem:[#allocation2 + $0x90] sm:$0xff]
        %v372 = vld [vmem:[#allocation2 + $0x98] sm:$0xff]
        %v373 = vld [vmem:[#allocation2 + $0xa0] sm:$0xff]
        %v374 = vld [vmem:[#allocation2 + $0xa8] sm:$0xff]
        %v375 = vld [vmem:[#allocation2 + $0xb0] sm:$0xff]
        %v376 = vld [vmem:[#allocation2 + $0xb8] sm:$0xff]
        %v377 = vld [vmem:[#allocation2 + $0xc0] sm:$0xff]
        %v378 = vld [vmem:[#allocation2 + $0xc8] sm:$0xff]
        %v379 = vld [vmem:[#allocation2 + $0xd0] sm:$0xff]
        %v380 = vld [vmem:[#allocation2 + $0xd8] sm:$0xff]
        %v381 = vld [vmem:[#allocation2 + $0xe0] sm:$0xff]
        %v382 = vld [vmem:[#allocation2 + $0xe8] sm:$0xff]
        %v383 = vld [vmem:[#allocation2 + $0xf0] sm:$0xff]
        %v384 = vld [vmem:[#allocation2 + $0xf8] sm:$0xff]
        %v385 = vld [vmem:[#allocation2 + $0x100] sm:$0xff]
        %v386 = vld [vmem:[#allocation2 + $0x108] sm:$0xff]
        %v387 = vld [vmem:[#allocation2 + $0x110] sm:$0xff]
        %v388 = vld [vmem:[#allocation2 + $0x118] sm:$0xff]
        %v389 = vld [vmem:[#allocation2 + $0x120] sm:$0xff]
        %v390 = vld [vmem:[#allocation2 + $0x128] sm:$0xff]
        %v391 = vld [vmem:[#allocation2 + $0x130] sm:$0xff]
        %v392 = vld [vmem:[#allocation2 + $0x138] sm:$0xff]
        %v393 = vld [vmem:[#allocation2 + $0x140] sm:$0xff]
        %v394 = vld [vmem:[#allocation2 + $0x148] sm:$0xff]
        %v395 = vld [vmem:[#allocation2 + $0x150] sm:$0xff]
        %v396 = vld [vmem:[#allocation2 + $0x158] sm:$0xff]
        %v397 = vld [vmem:[#allocation2 + $0x160] sm:$0xff]
        %v398 = vld [vmem:[#allocation2 + $0x168] sm:$0xff]
        %v399 = vld [vmem:[#allocation2 + $0x170] sm:$0xff]
        %v400 = vld [vmem:[#allocation2 + $0x178] sm:$0xff]
        %v401 = vld [vmem:[#allocation2 + $0x180] sm:$0xff]
        %v402 = vld [vmem:[#allocation2 + $0x188] sm:$0xff]
        %v403 = vpack.c.bf16 %v355, %v353
        %v404 = vpack.c.bf16 %v356, %v354
        %v405 = vpack.c.bf16 %v359, %v357
        %v406 = vpack.c.bf16 %v360, %v358
        %v407 = vpack.c.bf16 %v363, %v361
        %v408 = vpack.c.bf16 %v364, %v362
        %v409 = vpack.c.bf16 %v367, %v365
        %v410 = vpack.c.bf16 %v368, %v366
        %v411 = vpack.c.bf16 %v371, %v369
        %v412 = vpack.c.bf16 %v372, %v370
        %v413 = vpack.c.bf16 %v375, %v373
        %v414 = vpack.c.bf16 %v376, %v374
        %v415 = vpack.c.bf16 %v379, %v377
        %v416 = vpack.c.bf16 %v380, %v378
        %v417 = vpack.c.bf16 %v383, %v381
        %v418 = vpack.c.bf16 %v384, %v382
        %v419 = vpack.c.bf16 %v387, %v385
        %v420 = vpack.c.bf16 %v388, %v386
        %v421 = vpack.c.bf16 %v391, %v389
        %v422 = vpack.c.bf16 %v392, %v390
        %v423 = vpack.c.bf16 %v395, %v393
        %v424 = vpack.c.bf16 %v396, %v394
        %v425 = vpack.c.bf16 %v399, %v397
        %v426 = vpack.c.bf16 %v400, %v398
        %v427 = vpack.c.bf16 %v401, %v401
        %v428 = vpack.c.bf16 %v402, %v402
        %v429 = vld [vmem:[%s297] sm:$0xff]
        %v430 = vld [vmem:[%s297 + $0x8] sm:$0xff]
        %v431 = vld [vmem:[%s297 + $0x10] sm:$0xff]
        %v432 = vld [vmem:[%s297 + $0x18] sm:$0xff]
        %v433 = vld [vmem:[%s297 + $0x20] sm:$0xff]
        %v434 = vld [vmem:[%s297 + $0x28] sm:$0xff]
        %v435 = vld [vmem:[%s297 + $0x30] sm:$0xff]
        %v436 = vld [vmem:[%s297 + $0x38] sm:$0xff]
        %v437 = vld [vmem:[%s297 + $0x40] sm:$0xff]
        %v438 = vld [vmem:[%s297 + $0x48] sm:$0xff]
        %v439 = vld [vmem:[%s297 + $0x50] sm:$0xff]
        %v440 = vld [vmem:[%s297 + $0x58] sm:$0xff]
        %v441 = vld [vmem:[%s297 + $0x60] sm:$0xff]
        %v442 = vld [vmem:[%s297 + $0x68] sm:$0xff]
        %v443 = vld [vmem:[%s297 + $0x70] sm:$0xff]
        %v444 = vld [vmem:[%s297 + $0x78] sm:$0xff]
        %v445 = vld [vmem:[%s297 + $0x80] sm:$0xff]
        %v446 = vld [vmem:[%s297 + $0x88] sm:$0xff]
        %v447 = vld [vmem:[%s297 + $0x90] sm:$0xff]
        %v448 = vld [vmem:[%s297 + $0x98] sm:$0xff]
        %v449 = vld [vmem:[%s297 + $0xa0] sm:$0xff]
        %v450 = vld [vmem:[%s297 + $0xa8] sm:$0xff]
        %v451 = vld [vmem:[%s297 + $0xb0] sm:$0xff]
        %v452 = vld [vmem:[%s297 + $0xb8] sm:$0xff]
        %v453 = vld [vmem:[%s297 + $0xc0] sm:$0xff]
        %v454 = vld [vmem:[%s297 + $0xc8] sm:$0xff]
        %v455 = vld [vmem:[%s297 + $0xd0] sm:$0xff]
        %v456 = vld [vmem:[%s297 + $0xd8] sm:$0xff]
        %v457 = vld [vmem:[%s297 + $0xe0] sm:$0xff]
        %v458 = vld [vmem:[%s297 + $0xe8] sm:$0xff]
        %v459 = vld [vmem:[%s297 + $0xf0] sm:$0xff]
        %v460 = vld [vmem:[%s297 + $0xf8] sm:$0xff]
        %v461 = vld [vmem:[%s297 + $0x100] sm:$0xff]
        %v462 = vld [vmem:[%s297 + $0x108] sm:$0xff]
        %v463 = vld [vmem:[%s297 + $0x110] sm:$0xff]
        %v464 = vld [vmem:[%s297 + $0x118] sm:$0xff]
        %v465 = vld [vmem:[%s297 + $0x120] sm:$0xff]
        %v466 = vld [vmem:[%s297 + $0x128] sm:$0xff]
        %v467 = vld [vmem:[%s297 + $0x130] sm:$0xff]
        %v468 = vld [vmem:[%s297 + $0x138] sm:$0xff]
        %v469 = vld [vmem:[%s297 + $0x140] sm:$0xff]
        %v470 = vld [vmem:[%s297 + $0x148] sm:$0xff]
        %v471 = vld [vmem:[%s297 + $0x150] sm:$0xff]
        %v472 = vld [vmem:[%s297 + $0x158] sm:$0xff]
        %v473 = vld [vmem:[%s297 + $0x160] sm:$0xff]
        %v474 = vld [vmem:[%s297 + $0x168] sm:$0xff]
        %v475 = vld [vmem:[%s297 + $0x170] sm:$0xff]
        %v476 = vld [vmem:[%s297 + $0x178] sm:$0xff]
        %v477 = vld [vmem:[%s297 + $0x180] sm:$0xff]
        %v478 = vld [vmem:[%s297 + $0x188] sm:$0xff]
        %v479 = vld [vmem:[%s297 + $0x190] sm:$0xff]
        %v480 = vld [vmem:[%s297 + $0x198] sm:$0xff]
        %v481 = vld [vmem:[%s297 + $0x1a0] sm:$0xff]
        %v482 = vld [vmem:[%s297 + $0x1a8] sm:$0xff]
        %v483 = vld [vmem:[%s297 + $0x1b0] sm:$0xff]
        %v484 = vld [vmem:[%s297 + $0x1b8] sm:$0xff]
        %v485 = vld [vmem:[%s297 + $0x1c0] sm:$0xff]
        %v486 = vld [vmem:[%s297 + $0x1c8] sm:$0xff]
        %v487 = vld [vmem:[%s297 + $0x1d0] sm:$0xff]
        %v488 = vld [vmem:[%s297 + $0x1d8] sm:$0xff]
        %v489 = vld [vmem:[%s297 + $0x1e0] sm:$0xff]
        %v490 = vld [vmem:[%s297 + $0x1e8] sm:$0xff]
        %v491 = vld [vmem:[%s297 + $0x1f0] sm:$0xff]
        %v492 = vld [vmem:[%s297 + $0x1f8] sm:$0xff]
        %v493 = vld [vmem:[%s306] sm:$0xf]
        %v495 = vlaneseq
        %v496 = vshrl.u32 %v495, 7
        %v497 = vsub.s32 0, %v496
        %v498 = vrot.slane %v493, %v497
        %v499 = vlaneseq
        %v500 = vshrl.u32 %v499, 7
        %v501 = vsub.s32 1, %v500
        %v502 = vrot.slane %v493, %v501
        %v503 = vlaneseq
        %v504 = vshrl.u32 %v503, 7
        %v505 = vsub.s32 2, %v504
        %v506 = vrot.slane %v493, %v505
        %v507 = vlaneseq
        %v508 = vshrl.u32 %v507, 7
        %v509 = vsub.s32 3, %v508
        %v510 = vrot.slane %v493, %v509
        %v579 = vunpack.c.l.b16 %v429
        %v580 = vunpack.c.h.b16 %v429
        %v581 = vunpack.c.l.b16 %v430
        %v582 = vunpack.c.h.b16 %v430
        %v583 = vunpack.c.l.b16 %v431
        %v584 = vunpack.c.h.b16 %v431
        %v585 = vunpack.c.l.b16 %v432
        %v586 = vunpack.c.h.b16 %v432
        %v587 = vunpack.c.l.b16 %v433
        %v588 = vunpack.c.h.b16 %v433
        %v589 = vunpack.c.l.b16 %v434
        %v590 = vunpack.c.h.b16 %v434
        %v591 = vunpack.c.l.b16 %v435
        %v592 = vunpack.c.h.b16 %v435
        %v593 = vunpack.c.l.b16 %v436
        %v594 = vunpack.c.h.b16 %v436
        %v595 = vunpack.c.l.b16 %v437
        %v596 = vunpack.c.h.b16 %v437
        %v597 = vunpack.c.l.b16 %v438
        %v598 = vunpack.c.h.b16 %v438
        %v599 = vunpack.c.l.b16 %v439
        %v600 = vunpack.c.h.b16 %v439
        %v601 = vunpack.c.l.b16 %v440
        %v602 = vunpack.c.h.b16 %v440
        %v603 = vunpack.c.l.b16 %v441
        %v604 = vunpack.c.h.b16 %v441
        %v605 = vunpack.c.l.b16 %v442
        %v606 = vunpack.c.h.b16 %v442
        %v607 = vunpack.c.l.b16 %v443
        %v608 = vunpack.c.h.b16 %v443
        %v609 = vunpack.c.l.b16 %v444
        %v610 = vunpack.c.h.b16 %v444
        %v611 = vunpack.c.l.b16 %v445
        %v612 = vunpack.c.h.b16 %v445
        %v613 = vunpack.c.l.b16 %v446
        %v614 = vunpack.c.h.b16 %v446
        %v615 = vunpack.c.l.b16 %v447
        %v616 = vunpack.c.h.b16 %v447
        %v617 = vunpack.c.l.b16 %v448
        %v618 = vunpack.c.h.b16 %v448
        %v619 = vunpack.c.l.b16 %v449
        %v620 = vunpack.c.h.b16 %v449
        %v621 = vunpack.c.l.b16 %v450
        %v622 = vunpack.c.h.b16 %v450
        %v623 = vunpack.c.l.b16 %v451
        %v624 = vunpack.c.h.b16 %v451
        %v625 = vunpack.c.l.b16 %v452
        %v626 = vunpack.c.h.b16 %v452
        %v627 = vunpack.c.l.b16 %v453
        %v628 = vunpack.c.h.b16 %v453
        %v629 = vunpack.c.l.b16 %v454
        %v630 = vunpack.c.h.b16 %v454
        %v631 = vunpack.c.l.b16 %v455
        %v632 = vunpack.c.h.b16 %v455
        %v633 = vunpack.c.l.b16 %v456
        %v634 = vunpack.c.h.b16 %v456
        %v635 = vunpack.c.l.b16 %v457
        %v636 = vunpack.c.h.b16 %v457
        %v637 = vunpack.c.l.b16 %v458
        %v638 = vunpack.c.h.b16 %v458
        %v639 = vunpack.c.l.b16 %v459
        %v640 = vunpack.c.h.b16 %v459
        %v641 = vunpack.c.l.b16 %v460
        %v642 = vunpack.c.h.b16 %v460
        %v643 = vunpack.c.l.b16 %v461
        %v644 = vunpack.c.h.b16 %v461
        %v645 = vunpack.c.l.b16 %v462
        %v646 = vunpack.c.h.b16 %v462
        %v647 = vunpack.c.l.b16 %v463
        %v648 = vunpack.c.h.b16 %v463
        %v649 = vunpack.c.l.b16 %v464
        %v650 = vunpack.c.h.b16 %v464
        %v651 = vunpack.c.l.b16 %v465
        %v652 = vunpack.c.h.b16 %v465
        %v653 = vunpack.c.l.b16 %v466
        %v654 = vunpack.c.h.b16 %v466
        %v655 = vunpack.c.l.b16 %v467
        %v656 = vunpack.c.h.b16 %v467
        %v657 = vunpack.c.l.b16 %v468
        %v658 = vunpack.c.h.b16 %v468
        %v659 = vunpack.c.l.b16 %v469
        %v660 = vunpack.c.h.b16 %v469
        %v661 = vunpack.c.l.b16 %v470
        %v662 = vunpack.c.h.b16 %v470
        %v663 = vunpack.c.l.b16 %v471
        %v664 = vunpack.c.h.b16 %v471
        %v665 = vunpack.c.l.b16 %v472
        %v666 = vunpack.c.h.b16 %v472
        %v667 = vunpack.c.l.b16 %v473
        %v668 = vunpack.c.h.b16 %v473
        %v669 = vunpack.c.l.b16 %v474
        %v670 = vunpack.c.h.b16 %v474
        %v671 = vunpack.c.l.b16 %v475
        %v672 = vunpack.c.h.b16 %v475
        %v673 = vunpack.c.l.b16 %v476
        %v674 = vunpack.c.h.b16 %v476
        %v675 = vunpack.c.l.b16 %v477
        %v676 = vunpack.c.h.b16 %v477
        %v677 = vunpack.c.l.b16 %v478
        %v678 = vunpack.c.h.b16 %v478
        %v679 = vunpack.c.l.b16 %v479
        %v680 = vunpack.c.h.b16 %v479
        %v681 = vunpack.c.l.b16 %v480
        %v682 = vunpack.c.h.b16 %v480
        %v683 = vunpack.c.l.b16 %v481
        %v684 = vunpack.c.h.b16 %v481
        %v685 = vunpack.c.l.b16 %v482
        %v686 = vunpack.c.h.b16 %v482
        %v687 = vunpack.c.l.b16 %v483
        %v688 = vunpack.c.h.b16 %v483
        %v689 = vunpack.c.l.b16 %v484
        %v690 = vunpack.c.h.b16 %v484
        %v691 = vunpack.c.l.b16 %v485
        %v692 = vunpack.c.h.b16 %v485
        %v693 = vunpack.c.l.b16 %v486
        %v694 = vunpack.c.h.b16 %v486
        %v695 = vunpack.c.l.b16 %v487
        %v696 = vunpack.c.h.b16 %v487
        %v697 = vunpack.c.l.b16 %v488
        %v698 = vunpack.c.h.b16 %v488
        %v699 = vunpack.c.l.b16 %v489
        %v700 = vunpack.c.h.b16 %v489
        %v701 = vunpack.c.l.b16 %v490
        %v702 = vunpack.c.h.b16 %v490
        %v703 = vunpack.c.l.b16 %v491
        %v704 = vunpack.c.h.b16 %v491
        %v705 = vunpack.c.l.b16 %v492
        %v706 = vunpack.c.h.b16 %v492
        %v707 = vpack.c.b16 %v583, %v579
        %v708 = vpack.c.b16 %v584, %v580
        %v709 = vpack.c.b16 %v585, %v581
        %v710 = vpack.c.b16 %v586, %v582
        %v711 = vpack.c.b16 %v591, %v587
        %v712 = vpack.c.b16 %v592, %v588
        %v713 = vpack.c.b16 %v593, %v589
        %v714 = vpack.c.b16 %v594, %v590
        %v715 = vpack.c.b16 %v599, %v595
        %v716 = vpack.c.b16 %v600, %v596
        %v717 = vpack.c.b16 %v601, %v597
        %v718 = vpack.c.b16 %v602, %v598
        %v719 = vpack.c.b16 %v607, %v603
        %v720 = vpack.c.b16 %v608, %v604
        %v721 = vpack.c.b16 %v609, %v605
        %v722 = vpack.c.b16 %v610, %v606
        %v723 = vpack.c.b16 %v615, %v611
        %v724 = vpack.c.b16 %v616, %v612
        %v725 = vpack.c.b16 %v617, %v613
        %v726 = vpack.c.b16 %v618, %v614
        %v727 = vpack.c.b16 %v623, %v619
        %v728 = vpack.c.b16 %v624, %v620
        %v729 = vpack.c.b16 %v625, %v621
        %v730 = vpack.c.b16 %v626, %v622
        %v731 = vpack.c.b16 %v631, %v627
        %v732 = vpack.c.b16 %v632, %v628
        %v733 = vpack.c.b16 %v633, %v629
        %v734 = vpack.c.b16 %v634, %v630
        %v735 = vpack.c.b16 %v639, %v635
        %v736 = vpack.c.b16 %v640, %v636
        %v737 = vpack.c.b16 %v641, %v637
        %v738 = vpack.c.b16 %v642, %v638
        %v739 = vpack.c.b16 %v647, %v643
        %v740 = vpack.c.b16 %v648, %v644
        %v741 = vpack.c.b16 %v649, %v645
        %v742 = vpack.c.b16 %v650, %v646
        %v743 = vpack.c.b16 %v655, %v651
        %v744 = vpack.c.b16 %v656, %v652
        %v745 = vpack.c.b16 %v657, %v653
        %v746 = vpack.c.b16 %v658, %v654
        %v747 = vpack.c.b16 %v663, %v659
        %v748 = vpack.c.b16 %v664, %v660
        %v749 = vpack.c.b16 %v665, %v661
        %v750 = vpack.c.b16 %v666, %v662
        %v751 = vpack.c.b16 %v671, %v667
        %v752 = vpack.c.b16 %v672, %v668
        %v753 = vpack.c.b16 %v673, %v669
        %v754 = vpack.c.b16 %v674, %v670
        %v755 = vpack.c.b16 %v679, %v675
        %v756 = vpack.c.b16 %v680, %v676
        %v757 = vpack.c.b16 %v681, %v677
        %v758 = vpack.c.b16 %v682, %v678
        %v759 = vpack.c.b16 %v687, %v683
        %v760 = vpack.c.b16 %v688, %v684
        %v761 = vpack.c.b16 %v689, %v685
        %v762 = vpack.c.b16 %v690, %v686
        %v763 = vpack.c.b16 %v695, %v691
        %v764 = vpack.c.b16 %v696, %v692
        %v765 = vpack.c.b16 %v697, %v693
        %v766 = vpack.c.b16 %v698, %v694
        %v767 = vpack.c.b16 %v703, %v699
        %v768 = vpack.c.b16 %v704, %v700
        %v769 = vpack.c.b16 %v705, %v701
        %v770 = vpack.c.b16 %v706, %v702
        %835 = vmatprep.subr.bf16.mxu0 %v708
        %836 = vmatpush1.bf16.msra.mxu0 %v707
        %837 = vmatprep.subr.bf16.mxu0 %v712
        %838 = vmatpush1.bf16.msra.mxu0 %v711
        %839 = vmatprep.subr.bf16.mxu0 %v716
        %840 = vmatpush1.bf16.msra.mxu0 %v715
        %841 = vmatprep.subr.bf16.mxu0 %v720
        %842 = vmatpush1.bf16.msra.mxu0 %v719
        %843 = vmatprep.subr.bf16.mxu0 %v724
        %844 = vmatpush1.bf16.msra.mxu0 %v723
        %845 = vmatprep.subr.bf16.mxu0 %v728
        %846 = vmatpush1.bf16.msra.mxu0 %v727
        %847 = vmatprep.subr.bf16.mxu0 %v732
        %848 = vmatpush1.bf16.msra.mxu0 %v731
        %849 = vmatprep.subr.bf16.mxu0 %v736
        %850 = vmatpush1.bf16.msra.mxu0 %v735
        %851 = vmatprep.subr.bf16.mxu0 %v740
        %852 = vmatpush1.bf16.msra.mxu0 %v739
        %853 = vmatprep.subr.bf16.mxu0 %v744
        %854 = vmatpush1.bf16.msra.mxu0 %v743
        %855 = vmatprep.subr.bf16.mxu0 %v748
        %856 = vmatpush1.bf16.msra.mxu0 %v747
        %857 = vmatprep.subr.bf16.mxu0 %v752
        %858 = vmatpush1.bf16.msra.mxu0 %v751
        %859 = vmatprep.subr.bf16.mxu0 %v756
        %860 = vmatpush1.bf16.msra.mxu0 %v755
        %861 = vmatprep.subr.bf16.mxu0 %v760
        %862 = vmatpush1.bf16.msra.mxu0 %v759
        %863 = vmatprep.subr.bf16.mxu0 %v764
        %864 = vmatpush1.bf16.msra.mxu0 %v763
        %865 = vmatprep.subr.bf16.mxu0 %v768
        %866 = vmatpush1.bf16.msra.mxu0 %v767
        %867 = vmatprep.mubr.bf16.mxu0 %v404
        %868 = vmatmul.mubr.bf16.gmra.mrb[0].mxu0 %v403
        %v869 = vpop.f32.mrb[0].mxu0
        %v870 = vadd.f32 %v498, %v869
        %v871 = vpop.f32.mrb[0].mxu0
        %v872 = vadd.f32 %v502, %v871
        %v873 = vpop.f32.mrb[0].mxu0
        %v874 = vadd.f32 %v498, %v873
        %v875 = vpop.f32.mrb[0].mxu0
        %v876 = vadd.f32 %v502, %v875
        %877 = vmatprep.mubr.bf16.mxu0 %v406
        %878 = vmatmul.mubr.bf16.gmra.mrb[0].mxu0 %v405
        %v879 = vpop.f32.mrb[0].mxu0
        %v880 = vadd.f32 %v498, %v879
        %v881 = vpop.f32.mrb[0].mxu0
        %v882 = vadd.f32 %v502, %v881
        %v883 = vpop.f32.mrb[0].mxu0
        %v884 = vadd.f32 %v498, %v883
        %v885 = vpop.f32.mrb[0].mxu0
        %v886 = vadd.f32 %v502, %v885
        %887 = vmatprep.mubr.bf16.mxu0 %v408
        %888 = vmatmul.mubr.bf16.gmra.mrb[0].mxu0 %v407
        %v889 = vpop.f32.mrb[0].mxu0
        %v890 = vadd.f32 %v498, %v889
        %v891 = vpop.f32.mrb[0].mxu0
        %v892 = vadd.f32 %v502, %v891
        %v893 = vpop.f32.mrb[0].mxu0
        %v894 = vadd.f32 %v498, %v893
        %v895 = vpop.f32.mrb[0].mxu0
        %v896 = vadd.f32 %v502, %v895
        %897 = vmatprep.mubr.bf16.mxu0 %v410
        %898 = vmatmul.mubr.bf16.gmra.mrb[0].mxu0 %v409
        %v899 = vpop.f32.mrb[0].mxu0
        %v900 = vadd.f32 %v498, %v899
        %v901 = vpop.f32.mrb[0].mxu0
        %v902 = vadd.f32 %v502, %v901
        %v903 = vpop.f32.mrb[0].mxu0
        %v904 = vadd.f32 %v498, %v903
        %v905 = vpop.f32.mrb[0].mxu0
        %v906 = vadd.f32 %v502, %v905
        %907 = vmatprep.mubr.bf16.mxu0 %v412
        %908 = vmatmul.mubr.bf16.gmra.mrb[0].mxu0 %v411
        %v909 = vpop.f32.mrb[0].mxu0
        %v910 = vadd.f32 %v498, %v909
        %v911 = vpop.f32.mrb[0].mxu0
        %v912 = vadd.f32 %v502, %v911
        %v913 = vpop.f32.mrb[0].mxu0
        %v914 = vadd.f32 %v498, %v913
        %v915 = vpop.f32.mrb[0].mxu0
        %v916 = vadd.f32 %v502, %v915
        %917 = vmatprep.mubr.bf16.mxu0 %v414
        %918 = vmatmul.mubr.bf16.gmra.mrb[0].mxu0 %v413
        %v919 = vpop.f32.mrb[0].mxu0
        %v920 = vadd.f32 %v498, %v919
        %v921 = vpop.f32.mrb[0].mxu0
        %v922 = vadd.f32 %v502, %v921
        %v923 = vpop.f32.mrb[0].mxu0
        %v924 = vadd.f32 %v498, %v923
        %v925 = vpop.f32.mrb[0].mxu0
        %v926 = vadd.f32 %v502, %v925
        %927 = vmatprep.mubr.bf16.mxu0 %v416
        %928 = vmatmul.mubr.bf16.gmra.mrb[0].mxu0 %v415
        %v929 = vpop.f32.mrb[0].mxu0
        %v930 = vadd.f32 %v498, %v929
        %v931 = vpop.f32.mrb[0].mxu0
        %v932 = vadd.f32 %v502, %v931
        %v933 = vpop.f32.mrb[0].mxu0
        %v934 = vadd.f32 %v498, %v933
        %v935 = vpop.f32.mrb[0].mxu0
        %v936 = vadd.f32 %v502, %v935
        %937 = vmatprep.mubr.bf16.mxu0 %v418
        %938 = vmatmul.mubr.bf16.gmra.mrb[0].mxu0 %v417
        %v939 = vpop.f32.mrb[0].mxu0
        %v940 = vadd.f32 %v498, %v939
        %v941 = vpop.f32.mrb[0].mxu0
        %v942 = vadd.f32 %v502, %v941
        %v943 = vpop.f32.mrb[0].mxu0
        %v944 = vadd.f32 %v498, %v943
        %v945 = vpop.f32.mrb[0].mxu0
        %v946 = vadd.f32 %v502, %v945
        %947 = vmatprep.mubr.bf16.mxu0 %v420
        %948 = vmatmul.mubr.bf16.gmra.mrb[0].mxu0 %v419
        %v949 = vpop.f32.mrb[0].mxu0
        %v950 = vadd.f32 %v498, %v949
        %v951 = vpop.f32.mrb[0].mxu0
        %v952 = vadd.f32 %v502, %v951
        %v953 = vpop.f32.mrb[0].mxu0
        %v954 = vadd.f32 %v498, %v953
        %v955 = vpop.f32.mrb[0].mxu0
        %v956 = vadd.f32 %v502, %v955
        %957 = vmatprep.mubr.bf16.mxu0 %v422
        %958 = vmatmul.mubr.bf16.gmra.mrb[0].mxu0 %v421
        %v959 = vpop.f32.mrb[0].mxu0
        %v960 = vadd.f32 %v498, %v959
        %v961 = vpop.f32.mrb[0].mxu0
        %v962 = vadd.f32 %v502, %v961
        %v963 = vpop.f32.mrb[0].mxu0
        %v964 = vadd.f32 %v498, %v963
        %v965 = vpop.f32.mrb[0].mxu0
        %v966 = vadd.f32 %v502, %v965
        %967 = vmatprep.mubr.bf16.mxu0 %v424
        %968 = vmatmul.mubr.bf16.gmra.mrb[0].mxu0 %v423
        %v969 = vpop.f32.mrb[0].mxu0
        %v970 = vadd.f32 %v498, %v969
        %v971 = vpop.f32.mrb[0].mxu0
        %v972 = vadd.f32 %v502, %v971
        %v973 = vpop.f32.mrb[0].mxu0
        %v974 = vadd.f32 %v498, %v973
        %v975 = vpop.f32.mrb[0].mxu0
        %v976 = vadd.f32 %v502, %v975
        %977 = vmatprep.mubr.bf16.mxu0 %v426
        %978 = vmatmul.mubr.bf16.gmra.mrb[0].mxu0 %v425
        %v979 = vpop.f32.mrb[0].mxu0
        %v980 = vadd.f32 %v498, %v979
        %v981 = vpop.f32.mrb[0].mxu0
        %v982 = vadd.f32 %v502, %v981
        %v983 = vpop.f32.mrb[0].mxu0
        %v984 = vadd.f32 %v498, %v983
        %v985 = vpop.f32.mrb[0].mxu0
        %v986 = vadd.f32 %v502, %v985
        %987 = vmatprep.mubr.bf16.mxu0 %v428
        %988 = vmatmul.mubr.bf16.gmra.mrb[0].mxu0 %v427
        %v989 = vpop.f32.mrb[0].mxu0
        %v990 = vadd.f32 %v498, %v989
        %v991 = vpop.f32.mrb[0].mxu0
        %v992 = vadd.f32 %v502, %v991
        %v993 = vpop.f32.mrb[0].mxu0
        %v994 = vpop.f32.mrb[0].mxu0
        %995 = vdwg.mxu0
        %996 = vmatprep.subr.bf16.mxu0 %v710
        %997 = vmatpush1.bf16.msra.mxu0 %v709
        %998 = vmatprep.subr.bf16.mxu0 %v714
        %999 = vmatpush1.bf16.msra.mxu0 %v713
        %1000 = vmatprep.subr.bf16.mxu0 %v718
        %1001 = vmatpush1.bf16.msra.mxu0 %v717
        %1002 = vmatprep.subr.bf16.mxu0 %v722
        %1003 = vmatpush1.bf16.msra.mxu0 %v721
        %1004 = vmatprep.subr.bf16.mxu0 %v726
        %1005 = vmatpush1.bf16.msra.mxu0 %v725
        %1006 = vmatprep.subr.bf16.mxu0 %v730
        %1007 = vmatpush1.bf16.msra.mxu0 %v729
        %1008 = vmatprep.subr.bf16.mxu0 %v734
        %1009 = vmatpush1.bf16.msra.mxu0 %v733
        %1010 = vmatprep.subr.bf16.mxu0 %v738
        %1011 = vmatpush1.bf16.msra.mxu0 %v737
        %1012 = vmatprep.subr.bf16.mxu0 %v742
        %1013 = vmatpush1.bf16.msra.mxu0 %v741
        %1014 = vmatprep.subr.bf16.mxu0 %v746
        %1015 = vmatpush1.bf16.msra.mxu0 %v745
        %1016 = vmatprep.subr.bf16.mxu0 %v750
        %1017 = vmatpush1.bf16.msra.mxu0 %v749
        %1018 = vmatprep.subr.bf16.mxu0 %v754
        %1019 = vmatpush1.bf16.msra.mxu0 %v753
        %1020 = vmatprep.subr.bf16.mxu0 %v758
        %1021 = vmatpush1.bf16.msra.mxu0 %v757
        %1022 = vmatprep.subr.bf16.mxu0 %v762
        %1023 = vmatpush1.bf16.msra.mxu0 %v761
        %1024 = vmatprep.subr.bf16.mxu0 %v766
        %1025 = vmatpush1.bf16.msra.mxu0 %v765
        %1026 = vmatprep.subr.bf16.mxu0 %v770
        %1027 = vmatpush1.bf16.msra.mxu0 %v769
        %1028 = vmatprep.mubr.bf16.mxu0 %v404
        %1029 = vmatmul.mubr.bf16.gmra.mrb[0].mxu0 %v403
        %v1030 = vpop.f32.mrb[0].mxu0
        %v1031 = vadd.f32 %v506, %v1030
        %v1032 = vpop.f32.mrb[0].mxu0
        %v1033 = vadd.f32 %v510, %v1032
        %v1034 = vpop.f32.mrb[0].mxu0
        %v1035 = vadd.f32 %v506, %v1034
        %v1036 = vpop.f32.mrb[0].mxu0
        %v1037 = vadd.f32 %v510, %v1036
        %1038 = vmatprep.mubr.bf16.mxu0 %v406
        %1039 = vmatmul.mubr.bf16.gmra.mrb[0].mxu0 %v405
        %v1040 = vpop.f32.mrb[0].mxu0
        %v1041 = vadd.f32 %v506, %v1040
        %v1042 = vpop.f32.mrb[0].mxu0
        %v1043 = vadd.f32 %v510, %v1042
        %v1044 = vpop.f32.mrb[0].mxu0
        %v1045 = vadd.f32 %v506, %v1044
        %v1046 = vpop.f32.mrb[0].mxu0
        %v1047 = vadd.f32 %v510, %v1046
        %1048 = vmatprep.mubr.bf16.mxu0 %v408
        %1049 = vmatmul.mubr.bf16.gmra.mrb[0].mxu0 %v407
        %v1050 = vpop.f32.mrb[0].mxu0
        %v1051 = vadd.f32 %v506, %v1050
        %v1052 = vpop.f32.mrb[0].mxu0
        %v1053 = vadd.f32 %v510, %v1052
        %v1054 = vpop.f32.mrb[0].mxu0
        %v1055 = vadd.f32 %v506, %v1054
        %v1056 = vpop.f32.mrb[0].mxu0
        %v1057 = vadd.f32 %v510, %v1056
        %1058 = vmatprep.mubr.bf16.mxu0 %v410
        %1059 = vmatmul.mubr.bf16.gmra.mrb[0].mxu0 %v409
        %v1060 = vpop.f32.mrb[0].mxu0
        %v1061 = vadd.f32 %v506, %v1060
        %v1062 = vpop.f32.mrb[0].mxu0
        %v1063 = vadd.f32 %v510, %v1062
        %v1064 = vpop.f32.mrb[0].mxu0
        %v1065 = vadd.f32 %v506, %v1064
        %v1066 = vpop.f32.mrb[0].mxu0
        %v1067 = vadd.f32 %v510, %v1066
        %1068 = vmatprep.mubr.bf16.mxu0 %v412
        %1069 = vmatmul.mubr.bf16.gmra.mrb[0].mxu0 %v411
        %v1070 = vpop.f32.mrb[0].mxu0
        %v1071 = vadd.f32 %v506, %v1070
        %v1072 = vpop.f32.mrb[0].mxu0
        %v1073 = vadd.f32 %v510, %v1072
        %v1074 = vpop.f32.mrb[0].mxu0
        %v1075 = vadd.f32 %v506, %v1074
        %v1076 = vpop.f32.mrb[0].mxu0
        %v1077 = vadd.f32 %v510, %v1076
        %1078 = vmatprep.mubr.bf16.mxu0 %v414
        %1079 = vmatmul.mubr.bf16.gmra.mrb[0].mxu0 %v413
        %v1080 = vpop.f32.mrb[0].mxu0
        %v1081 = vadd.f32 %v506, %v1080
        %v1082 = vpop.f32.mrb[0].mxu0
        %v1083 = vadd.f32 %v510, %v1082
        %v1084 = vpop.f32.mrb[0].mxu0
        %v1085 = vadd.f32 %v506, %v1084
        %v1086 = vpop.f32.mrb[0].mxu0
        %v1087 = vadd.f32 %v510, %v1086
        %1088 = vmatprep.mubr.bf16.mxu0 %v416
        %1089 = vmatmul.mubr.bf16.gmra.mrb[0].mxu0 %v415
        %v1090 = vpop.f32.mrb[0].mxu0
        %v1091 = vadd.f32 %v506, %v1090
        %v1092 = vpop.f32.mrb[0].mxu0
        %v1093 = vadd.f32 %v510, %v1092
        %v1094 = vpop.f32.mrb[0].mxu0
        %v1095 = vadd.f32 %v506, %v1094
        %v1096 = vpop.f32.mrb[0].mxu0
        %v1097 = vadd.f32 %v510, %v1096
        %1098 = vmatprep.mubr.bf16.mxu0 %v418
        %1099 = vmatmul.mubr.bf16.gmra.mrb[0].mxu0 %v417
        %v1100 = vpop.f32.mrb[0].mxu0
        %v1101 = vadd.f32 %v506, %v1100
        %v1102 = vpop.f32.mrb[0].mxu0
        %v1103 = vadd.f32 %v510, %v1102
        %v1104 = vpop.f32.mrb[0].mxu0
        %v1105 = vadd.f32 %v506, %v1104
        %v1106 = vpop.f32.mrb[0].mxu0
        %v1107 = vadd.f32 %v510, %v1106
        %1108 = vmatprep.mubr.bf16.mxu0 %v420
        %1109 = vmatmul.mubr.bf16.gmra.mrb[0].mxu0 %v419
        %v1110 = vpop.f32.mrb[0].mxu0
        %v1111 = vadd.f32 %v506, %v1110
        %v1112 = vpop.f32.mrb[0].mxu0
        %v1113 = vadd.f32 %v510, %v1112
        %v1114 = vpop.f32.mrb[0].mxu0
        %v1115 = vadd.f32 %v506, %v1114
        %v1116 = vpop.f32.mrb[0].mxu0
        %v1117 = vadd.f32 %v510, %v1116
        %1118 = vmatprep.mubr.bf16.mxu0 %v422
        %1119 = vmatmul.mubr.bf16.gmra.mrb[0].mxu0 %v421
        %v1120 = vpop.f32.mrb[0].mxu0
        %v1121 = vadd.f32 %v506, %v1120
        %v1122 = vpop.f32.mrb[0].mxu0
        %v1123 = vadd.f32 %v510, %v1122
        %v1124 = vpop.f32.mrb[0].mxu0
        %v1125 = vadd.f32 %v506, %v1124
        %v1126 = vpop.f32.mrb[0].mxu0
        %v1127 = vadd.f32 %v510, %v1126
        %1128 = vmatprep.mubr.bf16.mxu0 %v424
        %1129 = vmatmul.mubr.bf16.gmra.mrb[0].mxu0 %v423
        %v1130 = vpop.f32.mrb[0].mxu0
        %v1131 = vadd.f32 %v506, %v1130
        %v1132 = vpop.f32.mrb[0].mxu0
        %v1133 = vadd.f32 %v510, %v1132
        %v1134 = vpop.f32.mrb[0].mxu0
        %v1135 = vadd.f32 %v506, %v1134
        %v1136 = vpop.f32.mrb[0].mxu0
        %v1137 = vadd.f32 %v510, %v1136
        %1138 = vmatprep.mubr.bf16.mxu0 %v426
        %1139 = vmatmul.mubr.bf16.gmra.mrb[0].mxu0 %v425
        %v1140 = vpop.f32.mrb[0].mxu0
        %v1141 = vadd.f32 %v506, %v1140
        %v1142 = vpop.f32.mrb[0].mxu0
        %v1143 = vadd.f32 %v510, %v1142
        %v1144 = vpop.f32.mrb[0].mxu0
        %v1145 = vadd.f32 %v506, %v1144
        %v1146 = vpop.f32.mrb[0].mxu0
        %v1147 = vadd.f32 %v510, %v1146
        %1148 = vmatprep.mubr.bf16.mxu0 %v428
        %1149 = vmatmul.mubr.bf16.gmra.mrb[0].mxu0 %v427
        %v1150 = vpop.f32.mrb[0].mxu0
        %v1151 = vadd.f32 %v506, %v1150
        %v1152 = vpop.f32.mrb[0].mxu0
        %v1153 = vadd.f32 %v510, %v1152
        %v1154 = vpop.f32.mrb[0].mxu0
        %v1155 = vpop.f32.mrb[0].mxu0
        %1156 = vdwg.mxu0
        %v1157 = vmax.f32 %v870, 0.0
        %v1158 = vmax.f32 %v872, 0.0
        %v1159 = vmax.f32 %v1031, 0.0
        %v1160 = vmax.f32 %v1033, 0.0
        %v1161 = vmax.f32 %v874, 0.0
        %v1162 = vmax.f32 %v876, 0.0
        %v1163 = vmax.f32 %v1035, 0.0
        %v1164 = vmax.f32 %v1037, 0.0
        %v1165 = vmax.f32 %v880, 0.0
        %v1166 = vmax.f32 %v882, 0.0
        %v1167 = vmax.f32 %v1041, 0.0
        %v1168 = vmax.f32 %v1043, 0.0
        %v1169 = vmax.f32 %v884, 0.0
        %v1170 = vmax.f32 %v886, 0.0
        %v1171 = vmax.f32 %v1045, 0.0
        %v1172 = vmax.f32 %v1047, 0.0
        %v1173 = vmax.f32 %v890, 0.0
        %v1174 = vmax.f32 %v892, 0.0
        %v1175 = vmax.f32 %v1051, 0.0
        %v1176 = vmax.f32 %v1053, 0.0
        %v1177 = vmax.f32 %v894, 0.0
        %v1178 = vmax.f32 %v896, 0.0
        %v1179 = vmax.f32 %v1055, 0.0
        %v1180 = vmax.f32 %v1057, 0.0
        %v1181 = vmax.f32 %v900, 0.0
        %v1182 = vmax.f32 %v902, 0.0
        %v1183 = vmax.f32 %v1061, 0.0
        %v1184 = vmax.f32 %v1063, 0.0
        %v1185 = vmax.f32 %v904, 0.0
        %v1186 = vmax.f32 %v906, 0.0
        %v1187 = vmax.f32 %v1065, 0.0
        %v1188 = vmax.f32 %v1067, 0.0
        %v1189 = vmax.f32 %v910, 0.0
        %v1190 = vmax.f32 %v912, 0.0
        %v1191 = vmax.f32 %v1071, 0.0
        %v1192 = vmax.f32 %v1073, 0.0
        %v1193 = vmax.f32 %v914, 0.0
        %v1194 = vmax.f32 %v916, 0.0
        %v1195 = vmax.f32 %v1075, 0.0
        %v1196 = vmax.f32 %v1077, 0.0
        %v1197 = vmax.f32 %v920, 0.0
        %v1198 = vmax.f32 %v922, 0.0
        %v1199 = vmax.f32 %v1081, 0.0
        %v1200 = vmax.f32 %v1083, 0.0
        %v1201 = vmax.f32 %v924, 0.0
        %v1202 = vmax.f32 %v926, 0.0
        %v1203 = vmax.f32 %v1085, 0.0
        %v1204 = vmax.f32 %v1087, 0.0
        %v1205 = vmax.f32 %v930, 0.0
        %v1206 = vmax.f32 %v932, 0.0
        %v1207 = vmax.f32 %v1091, 0.0
        %v1208 = vmax.f32 %v1093, 0.0
        %v1209 = vmax.f32 %v934, 0.0
        %v1210 = vmax.f32 %v936, 0.0
        %v1211 = vmax.f32 %v1095, 0.0
        %v1212 = vmax.f32 %v1097, 0.0
        %v1213 = vmax.f32 %v940, 0.0
        %v1214 = vmax.f32 %v942, 0.0
        %v1215 = vmax.f32 %v1101, 0.0
        %v1216 = vmax.f32 %v1103, 0.0
        %v1217 = vmax.f32 %v944, 0.0
        %v1218 = vmax.f32 %v946, 0.0
        %v1219 = vmax.f32 %v1105, 0.0
        %v1220 = vmax.f32 %v1107, 0.0
        %v1221 = vmax.f32 %v950, 0.0
        %v1222 = vmax.f32 %v952, 0.0
        %v1223 = vmax.f32 %v1111, 0.0
        %v1224 = vmax.f32 %v1113, 0.0
        %v1225 = vmax.f32 %v954, 0.0
        %v1226 = vmax.f32 %v956, 0.0
        %v1227 = vmax.f32 %v1115, 0.0
        %v1228 = vmax.f32 %v1117, 0.0
        %v1229 = vmax.f32 %v960, 0.0
        %v1230 = vmax.f32 %v962, 0.0
        %v1231 = vmax.f32 %v1121, 0.0
        %v1232 = vmax.f32 %v1123, 0.0
        %v1233 = vmax.f32 %v964, 0.0
        %v1234 = vmax.f32 %v966, 0.0
        %v1235 = vmax.f32 %v1125, 0.0
        %v1236 = vmax.f32 %v1127, 0.0
        %v1237 = vmax.f32 %v970, 0.0
        %v1238 = vmax.f32 %v972, 0.0
        %v1239 = vmax.f32 %v1131, 0.0
        %v1240 = vmax.f32 %v1133, 0.0
        %v1241 = vmax.f32 %v974, 0.0
        %v1242 = vmax.f32 %v976, 0.0
        %v1243 = vmax.f32 %v1135, 0.0
        %v1244 = vmax.f32 %v1137, 0.0
        %v1245 = vmax.f32 %v980, 0.0
        %v1246 = vmax.f32 %v982, 0.0
        %v1247 = vmax.f32 %v1141, 0.0
        %v1248 = vmax.f32 %v1143, 0.0
        %v1249 = vmax.f32 %v984, 0.0
        %v1250 = vmax.f32 %v986, 0.0
        %v1251 = vmax.f32 %v1145, 0.0
        %v1252 = vmax.f32 %v1147, 0.0
        %v1253 = vmax.f32 %v990, 0.0
        %v1254 = vmax.f32 %v992, 0.0
        %v1255 = vmax.f32 %v1151, 0.0
        %v1256 = vmax.f32 %v1153, 0.0
        %v1257 = vpack.c.bf16 %v1161, %v1157
        %v1258 = vpack.c.bf16 %v1162, %v1158
        %v1259 = vpack.c.bf16 %v1163, %v1159
        %v1260 = vpack.c.bf16 %v1164, %v1160
        %v1261 = vpack.c.bf16 %v1169, %v1165
        %v1262 = vpack.c.bf16 %v1170, %v1166
        %v1263 = vpack.c.bf16 %v1171, %v1167
        %v1264 = vpack.c.bf16 %v1172, %v1168
        %v1265 = vpack.c.bf16 %v1177, %v1173
        %v1266 = vpack.c.bf16 %v1178, %v1174
        %v1267 = vpack.c.bf16 %v1179, %v1175
        %v1268 = vpack.c.bf16 %v1180, %v1176
        %v1269 = vpack.c.bf16 %v1185, %v1181
        %v1270 = vpack.c.bf16 %v1186, %v1182
        %v1271 = vpack.c.bf16 %v1187, %v1183
        %v1272 = vpack.c.bf16 %v1188, %v1184
        %v1273 = vpack.c.bf16 %v1193, %v1189
        %v1274 = vpack.c.bf16 %v1194, %v1190
        %v1275 = vpack.c.bf16 %v1195, %v1191
        %v1276 = vpack.c.bf16 %v1196, %v1192
        %v1277 = vpack.c.bf16 %v1201, %v1197
        %v1278 = vpack.c.bf16 %v1202, %v1198
        %v1279 = vpack.c.bf16 %v1203, %v1199
        %v1280 = vpack.c.bf16 %v1204, %v1200
        %v1281 = vpack.c.bf16 %v1209, %v1205
        %v1282 = vpack.c.bf16 %v1210, %v1206
        %v1283 = vpack.c.bf16 %v1211, %v1207
        %v1284 = vpack.c.bf16 %v1212, %v1208
        %v1285 = vpack.c.bf16 %v1217, %v1213
        %v1286 = vpack.c.bf16 %v1218, %v1214
        %v1287 = vpack.c.bf16 %v1219, %v1215
        %v1288 = vpack.c.bf16 %v1220, %v1216
        %v1289 = vpack.c.bf16 %v1225, %v1221
        %v1290 = vpack.c.bf16 %v1226, %v1222
        %v1291 = vpack.c.bf16 %v1227, %v1223
        %v1292 = vpack.c.bf16 %v1228, %v1224
        %v1293 = vpack.c.bf16 %v1233, %v1229
        %v1294 = vpack.c.bf16 %v1234, %v1230
        %v1295 = vpack.c.bf16 %v1235, %v1231
        %v1296 = vpack.c.bf16 %v1236, %v1232
        %v1297 = vpack.c.bf16 %v1241, %v1237
        %v1298 = vpack.c.bf16 %v1242, %v1238
        %v1299 = vpack.c.bf16 %v1243, %v1239
        %v1300 = vpack.c.bf16 %v1244, %v1240
        %v1301 = vpack.c.bf16 %v1249, %v1245
        %v1302 = vpack.c.bf16 %v1250, %v1246
        %v1303 = vpack.c.bf16 %v1251, %v1247
        %v1304 = vpack.c.bf16 %v1252, %v1248
        %v1305 = vpack.c.bf16 %v1253, %v1253
        %v1306 = vpack.c.bf16 %v1254, %v1254
        %v1307 = vpack.c.bf16 %v1255, %v1255
        %v1308 = vpack.c.bf16 %v1256, %v1256
        %v1309 = vld [vmem:[%s315] sm:$0xf]
        %v1310 = vld [vmem:[%s315 + $0x4] sm:$0xf]
        %v1311 = vld [vmem:[%s315 + $0x8] sm:$0xf]
        %v1312 = vld [vmem:[%s315 + $0xc] sm:$0xf]
        %v1313 = vld [vmem:[%s315 + $0x10] sm:$0xf]
        %v1314 = vld [vmem:[%s315 + $0x14] sm:$0xf]
        %v1315 = vld [vmem:[%s315 + $0x18] sm:$0xf]
        %v1316 = vld [vmem:[%s315 + $0x1c] sm:$0xf]
        %v1317 = vld [vmem:[%s315 + $0x20] sm:$0xf]
        %v1318 = vld [vmem:[%s315 + $0x24] sm:$0xf]
        %v1319 = vld [vmem:[%s315 + $0x28] sm:$0xf]
        %v1320 = vld [vmem:[%s315 + $0x2c] sm:$0xf]
        %v1321 = vld [vmem:[%s315 + $0x30] sm:$0xf]
        %v1322 = vld [vmem:[%s315 + $0x34] sm:$0xf]
        %v1323 = vld [vmem:[%s315 + $0x38] sm:$0xf]
        %v1324 = vld [vmem:[%s315 + $0x3c] sm:$0xf]
        %v1325 = vld [vmem:[%s315 + $0x40] sm:$0xf]
        %v1326 = vld [vmem:[%s315 + $0x44] sm:$0xf]
        %v1327 = vld [vmem:[%s315 + $0x48] sm:$0xf]
        %v1328 = vld [vmem:[%s315 + $0x4c] sm:$0xf]
        %v1329 = vld [vmem:[%s315 + $0x50] sm:$0xf]
        %v1330 = vld [vmem:[%s315 + $0x54] sm:$0xf]
        %v1331 = vld [vmem:[%s315 + $0x58] sm:$0xf]
        %v1332 = vld [vmem:[%s315 + $0x5c] sm:$0xf]
        %v1333 = vld [vmem:[%s315 + $0x60] sm:$0xf]
        %v1334 = vld [vmem:[%s315 + $0x64] sm:$0xf]
        %v1335 = vld [vmem:[%s315 + $0x68] sm:$0xf]
        %v1336 = vld [vmem:[%s315 + $0x6c] sm:$0xf]
        %v1337 = vld [vmem:[%s315 + $0x70] sm:$0xf]
        %v1338 = vld [vmem:[%s315 + $0x74] sm:$0xf]
        %v1339 = vld [vmem:[%s315 + $0x78] sm:$0xf]
        %v1340 = vld [vmem:[%s315 + $0x7c] sm:$0xf]
        %v1341 = vld [vmem:[%s315 + $0x80] sm:$0xf]
        %v1342 = vld [vmem:[%s315 + $0x84] sm:$0xf]
        %v1343 = vld [vmem:[%s315 + $0x88] sm:$0xf]
        %v1344 = vld [vmem:[%s315 + $0x8c] sm:$0xf]
        %v1345 = vld [vmem:[%s315 + $0x90] sm:$0xf]
        %v1346 = vld [vmem:[%s315 + $0x94] sm:$0xf]
        %v1347 = vld [vmem:[%s315 + $0x98] sm:$0xf]
        %v1348 = vld [vmem:[%s315 + $0x9c] sm:$0xf]
        %v1349 = vld [vmem:[%s315 + $0xa0] sm:$0xf]
        %v1350 = vld [vmem:[%s315 + $0xa4] sm:$0xf]
        %v1351 = vld [vmem:[%s315 + $0xa8] sm:$0xf]
        %v1352 = vld [vmem:[%s315 + $0xac] sm:$0xf]
        %v1353 = vld [vmem:[%s315 + $0xb0] sm:$0xf]
        %v1354 = vld [vmem:[%s315 + $0xb4] sm:$0xf]
        %v1355 = vld [vmem:[%s315 + $0xb8] sm:$0xf]
        %v1356 = vld [vmem:[%s315 + $0xbc] sm:$0xf]
        %v1357 = vld [vmem:[%s315 + $0xc0] sm:$0xf]
        %v1358 = vld [vmem:[%s315 + $0xc4] sm:$0xf]
        %v1359 = vld [vmem:[%s315 + $0xc8] sm:$0xf]
        %v1360 = vld [vmem:[%s315 + $0xcc] sm:$0xf]
        %v1361 = vld [vmem:[%s315 + $0xd0] sm:$0xf]
        %v1362 = vld [vmem:[%s315 + $0xd4] sm:$0xf]
        %v1363 = vld [vmem:[%s315 + $0xd8] sm:$0xf]
        %v1364 = vld [vmem:[%s315 + $0xdc] sm:$0xf]
        %v1365 = vld [vmem:[%s315 + $0xe0] sm:$0xf]
        %v1366 = vld [vmem:[%s315 + $0xe4] sm:$0xf]
        %v1367 = vld [vmem:[%s315 + $0xe8] sm:$0xf]
        %v1368 = vld [vmem:[%s315 + $0xec] sm:$0xf]
        %v1369 = vld [vmem:[%s315 + $0xf0] sm:$0xf]
        %v1370 = vld [vmem:[%s315 + $0xf4] sm:$0xf]
        %v1371 = vld [vmem:[%s315 + $0xf8] sm:$0xf]
        %v1372 = vld [vmem:[%s315 + $0xfc] sm:$0xf]
        %v1437 = vunpack.c.l.b16 %v1309
        %v1438 = vunpack.c.l.b16 %v1310
        %v1439 = vunpack.c.l.b16 %v1311
        %v1440 = vunpack.c.l.b16 %v1312
        %v1441 = vunpack.c.l.b16 %v1313
        %v1442 = vunpack.c.l.b16 %v1314
        %v1443 = vunpack.c.l.b16 %v1315
        %v1444 = vunpack.c.l.b16 %v1316
        %v1445 = vunpack.c.l.b16 %v1317
        %v1446 = vunpack.c.l.b16 %v1318
        %v1447 = vunpack.c.l.b16 %v1319
        %v1448 = vunpack.c.l.b16 %v1320
        %v1449 = vunpack.c.l.b16 %v1321
        %v1450 = vunpack.c.l.b16 %v1322
        %v1451 = vunpack.c.l.b16 %v1323
        %v1452 = vunpack.c.l.b16 %v1324
        %v1453 = vunpack.c.l.b16 %v1325
        %v1454 = vunpack.c.l.b16 %v1326
        %v1455 = vunpack.c.l.b16 %v1327
        %v1456 = vunpack.c.l.b16 %v1328
        %v1457 = vunpack.c.l.b16 %v1329
        %v1458 = vunpack.c.l.b16 %v1330
        %v1459 = vunpack.c.l.b16 %v1331
        %v1460 = vunpack.c.l.b16 %v1332
        %v1461 = vunpack.c.l.b16 %v1333
        %v1462 = vunpack.c.l.b16 %v1334
        %v1463 = vunpack.c.l.b16 %v1335
        %v1464 = vunpack.c.l.b16 %v1336
        %v1465 = vunpack.c.l.b16 %v1337
        %v1466 = vunpack.c.l.b16 %v1338
        %v1467 = vunpack.c.l.b16 %v1339
        %v1468 = vunpack.c.l.b16 %v1340
        %v1469 = vunpack.c.l.b16 %v1341
        %v1470 = vunpack.c.l.b16 %v1342
        %v1471 = vunpack.c.l.b16 %v1343
        %v1472 = vunpack.c.l.b16 %v1344
        %v1473 = vunpack.c.l.b16 %v1345
        %v1474 = vunpack.c.l.b16 %v1346
        %v1475 = vunpack.c.l.b16 %v1347
        %v1476 = vunpack.c.l.b16 %v1348
        %v1477 = vunpack.c.l.b16 %v1349
        %v1478 = vunpack.c.l.b16 %v1350
        %v1479 = vunpack.c.l.b16 %v1351
        %v1480 = vunpack.c.l.b16 %v1352
        %v1481 = vunpack.c.l.b16 %v1353
        %v1482 = vunpack.c.l.b16 %v1354
        %v1483 = vunpack.c.l.b16 %v1355
        %v1484 = vunpack.c.l.b16 %v1356
        %v1485 = vunpack.c.l.b16 %v1357
        %v1486 = vunpack.c.l.b16 %v1358
        %v1487 = vunpack.c.l.b16 %v1359
        %v1488 = vunpack.c.l.b16 %v1360
        %v1489 = vunpack.c.l.b16 %v1361
        %v1490 = vunpack.c.l.b16 %v1362
        %v1491 = vunpack.c.l.b16 %v1363
        %v1492 = vunpack.c.l.b16 %v1364
        %v1493 = vunpack.c.l.b16 %v1365
        %v1494 = vunpack.c.l.b16 %v1366
        %v1495 = vunpack.c.l.b16 %v1367
        %v1496 = vunpack.c.l.b16 %v1368
        %v1497 = vunpack.c.l.b16 %v1369
        %v1498 = vunpack.c.l.b16 %v1370
        %v1499 = vunpack.c.l.b16 %v1371
        %v1500 = vunpack.c.l.b16 %v1372
        %v1501 = vpack.c.b16 %v1438, %v1437
        %v1502 = vpack.c.b16 %v1440, %v1439
        %v1503 = vpack.c.b16 %v1442, %v1441
        %v1504 = vpack.c.b16 %v1444, %v1443
        %v1505 = vpack.c.b16 %v1446, %v1445
        %v1506 = vpack.c.b16 %v1448, %v1447
        %v1507 = vpack.c.b16 %v1450, %v1449
        %v1508 = vpack.c.b16 %v1452, %v1451
        %v1509 = vpack.c.b16 %v1454, %v1453
        %v1510 = vpack.c.b16 %v1456, %v1455
        %v1511 = vpack.c.b16 %v1458, %v1457
        %v1512 = vpack.c.b16 %v1460, %v1459
        %v1513 = vpack.c.b16 %v1462, %v1461
        %v1514 = vpack.c.b16 %v1464, %v1463
        %v1515 = vpack.c.b16 %v1466, %v1465
        %v1516 = vpack.c.b16 %v1468, %v1467
        %v1517 = vpack.c.b16 %v1470, %v1469
        %v1518 = vpack.c.b16 %v1472, %v1471
        %v1519 = vpack.c.b16 %v1474, %v1473
        %v1520 = vpack.c.b16 %v1476, %v1475
        %v1521 = vpack.c.b16 %v1478, %v1477
        %v1522 = vpack.c.b16 %v1480, %v1479
        %v1523 = vpack.c.b16 %v1482, %v1481
        %v1524 = vpack.c.b16 %v1484, %v1483
        %v1525 = vpack.c.b16 %v1486, %v1485
        %v1526 = vpack.c.b16 %v1488, %v1487
        %v1527 = vpack.c.b16 %v1490, %v1489
        %v1528 = vpack.c.b16 %v1492, %v1491
        %v1529 = vpack.c.b16 %v1494, %v1493
        %v1530 = vpack.c.b16 %v1496, %v1495
        %v1531 = vpack.c.b16 %v1498, %v1497
        %v1532 = vpack.c.b16 %v1500, %v1499
        %1565 = vmatprep.subr.bf16.mxu0 0
        %1566 = vmatpush1.bf16.msra.mxu0 %v1501
        %1567 = vmatprep.subr.bf16.mxu0 0
        %1568 = vmatpush1.bf16.msra.mxu0 %v1502
        %1569 = vmatprep.subr.bf16.mxu0 0
        %1570 = vmatpush1.bf16.msra.mxu0 %v1503
        %1571 = vmatprep.subr.bf16.mxu0 0
        %1572 = vmatpush1.bf16.msra.mxu0 %v1504
        %1573 = vmatprep.subr.bf16.mxu0 0
        %1574 = vmatpush1.bf16.msra.mxu0 %v1505
        %1575 = vmatprep.subr.bf16.mxu0 0
        %1576 = vmatpush1.bf16.msra.mxu0 %v1506
        %1577 = vmatprep.subr.bf16.mxu0 0
        %1578 = vmatpush1.bf16.msra.mxu0 %v1507
        %1579 = vmatprep.subr.bf16.mxu0 0
        %1580 = vmatpush1.bf16.msra.mxu0 %v1508
        %1581 = vmatprep.subr.bf16.mxu0 0
        %1582 = vmatpush1.bf16.msra.mxu0 %v1509
        %1583 = vmatprep.subr.bf16.mxu0 0
        %1584 = vmatpush1.bf16.msra.mxu0 %v1510
        %1585 = vmatprep.subr.bf16.mxu0 0
        %1586 = vmatpush1.bf16.msra.mxu0 %v1511
        %1587 = vmatprep.subr.bf16.mxu0 0
        %1588 = vmatpush1.bf16.msra.mxu0 %v1512
        %1589 = vmatprep.subr.bf16.mxu0 0
        %1590 = vmatpush1.bf16.msra.mxu0 %v1513
        %1591 = vmatprep.subr.bf16.mxu0 0
        %1592 = vmatpush1.bf16.msra.mxu0 %v1514
        %1593 = vmatprep.subr.bf16.mxu0 0
        %1594 = vmatpush1.bf16.msra.mxu0 %v1515
        %1595 = vmatprep.subr.bf16.mxu0 0
        %1596 = vmatpush1.bf16.msra.mxu0 %v1516
        %1597 = vmatprep.mubr.bf16.mxu0 %v1258
        %1598 = vmatmul.mubr.bf16.gmra.mrb[0].mxu0 %v1257
        %v1599 = vpop.f32.mrb[0].mxu0
        %v1600 = vadd.f32 0.0, %v1599
        %v1601 = vpop.f32.mrb[0].mxu0
        %v1602 = vpop.f32.mrb[0].mxu0
        %v1603 = vadd.f32 0.0, %v1602
        %v1604 = vpop.f32.mrb[0].mxu0
        %1605 = vmatprep.mubr.bf16.mxu0 %v1262
        %1606 = vmatmul.mubr.bf16.gmra.mrb[0].mxu0 %v1261
        %v1607 = vpop.f32.mrb[0].mxu0
        %v1608 = vadd.f32 0.0, %v1607
        %v1609 = vpop.f32.mrb[0].mxu0
        %v1610 = vpop.f32.mrb[0].mxu0
        %v1611 = vadd.f32 0.0, %v1610
        %v1612 = vpop.f32.mrb[0].mxu0
        %1613 = vmatprep.mubr.bf16.mxu0 %v1266
        %1614 = vmatmul.mubr.bf16.gmra.mrb[0].mxu0 %v1265
        %v1615 = vpop.f32.mrb[0].mxu0
        %v1616 = vadd.f32 0.0, %v1615
        %v1617 = vpop.f32.mrb[0].mxu0
        %v1618 = vpop.f32.mrb[0].mxu0
        %v1619 = vadd.f32 0.0, %v1618
        %v1620 = vpop.f32.mrb[0].mxu0
        %1621 = vmatprep.mubr.bf16.mxu0 %v1270
        %1622 = vmatmul.mubr.bf16.gmra.mrb[0].mxu0 %v1269
        %v1623 = vpop.f32.mrb[0].mxu0
        %v1624 = vadd.f32 0.0, %v1623
        %v1625 = vpop.f32.mrb[0].mxu0
        %v1626 = vpop.f32.mrb[0].mxu0
        %v1627 = vadd.f32 0.0, %v1626
        %v1628 = vpop.f32.mrb[0].mxu0
        %1629 = vmatprep.mubr.bf16.mxu0 %v1274
        %1630 = vmatmul.mubr.bf16.gmra.mrb[0].mxu0 %v1273
        %v1631 = vpop.f32.mrb[0].mxu0
        %v1632 = vadd.f32 0.0, %v1631
        %v1633 = vpop.f32.mrb[0].mxu0
        %v1634 = vpop.f32.mrb[0].mxu0
        %v1635 = vadd.f32 0.0, %v1634
        %v1636 = vpop.f32.mrb[0].mxu0
        %1637 = vmatprep.mubr.bf16.mxu0 %v1278
        %1638 = vmatmul.mubr.bf16.gmra.mrb[0].mxu0 %v1277
        %v1639 = vpop.f32.mrb[0].mxu0
        %v1640 = vadd.f32 0.0, %v1639
        %v1641 = vpop.f32.mrb[0].mxu0
        %v1642 = vpop.f32.mrb[0].mxu0
        %v1643 = vadd.f32 0.0, %v1642
        %v1644 = vpop.f32.mrb[0].mxu0
        %1645 = vmatprep.mubr.bf16.mxu0 %v1282
        %1646 = vmatmul.mubr.bf16.gmra.mrb[0].mxu0 %v1281
        %v1647 = vpop.f32.mrb[0].mxu0
        %v1648 = vadd.f32 0.0, %v1647
        %v1649 = vpop.f32.mrb[0].mxu0
        %v1650 = vpop.f32.mrb[0].mxu0
        %v1651 = vadd.f32 0.0, %v1650
        %v1652 = vpop.f32.mrb[0].mxu0
        %1653 = vmatprep.mubr.bf16.mxu0 %v1286
        %1654 = vmatmul.mubr.bf16.gmra.mrb[0].mxu0 %v1285
        %v1655 = vpop.f32.mrb[0].mxu0
        %v1656 = vadd.f32 0.0, %v1655
        %v1657 = vpop.f32.mrb[0].mxu0
        %v1658 = vpop.f32.mrb[0].mxu0
        %v1659 = vadd.f32 0.0, %v1658
        %v1660 = vpop.f32.mrb[0].mxu0
        %1661 = vmatprep.mubr.bf16.mxu0 %v1290
        %1662 = vmatmul.mubr.bf16.gmra.mrb[0].mxu0 %v1289
        %v1663 = vpop.f32.mrb[0].mxu0
        %v1664 = vadd.f32 0.0, %v1663
        %v1665 = vpop.f32.mrb[0].mxu0
        %v1666 = vpop.f32.mrb[0].mxu0
        %v1667 = vadd.f32 0.0, %v1666
        %v1668 = vpop.f32.mrb[0].mxu0
        %1669 = vmatprep.mubr.bf16.mxu0 %v1294
        %1670 = vmatmul.mubr.bf16.gmra.mrb[0].mxu0 %v1293
        %v1671 = vpop.f32.mrb[0].mxu0
        %v1672 = vadd.f32 0.0, %v1671
        %v1673 = vpop.f32.mrb[0].mxu0
        %v1674 = vpop.f32.mrb[0].mxu0
        %v1675 = vadd.f32 0.0, %v1674
        %v1676 = vpop.f32.mrb[0].mxu0
        %1677 = vmatprep.mubr.bf16.mxu0 %v1298
        %1678 = vmatmul.mubr.bf16.gmra.mrb[0].mxu0 %v1297
        %v1679 = vpop.f32.mrb[0].mxu0
        %v1680 = vadd.f32 0.0, %v1679
        %v1681 = vpop.f32.mrb[0].mxu0
        %v1682 = vpop.f32.mrb[0].mxu0
        %v1683 = vadd.f32 0.0, %v1682
        %v1684 = vpop.f32.mrb[0].mxu0
        %1685 = vmatprep.mubr.bf16.mxu0 %v1302
        %1686 = vmatmul.mubr.bf16.gmra.mrb[0].mxu0 %v1301
        %v1687 = vpop.f32.mrb[0].mxu0
        %v1688 = vadd.f32 0.0, %v1687
        %v1689 = vpop.f32.mrb[0].mxu0
        %v1690 = vpop.f32.mrb[0].mxu0
        %v1691 = vadd.f32 0.0, %v1690
        %v1692 = vpop.f32.mrb[0].mxu0
        %1693 = vmatprep.mubr.bf16.mxu0 %v1306
        %1694 = vmatmul.mubr.bf16.gmra.mrb[0].mxu0 %v1305
        %v1695 = vpop.f32.mrb[0].mxu0
        %v1696 = vadd.f32 0.0, %v1695
        %v1697 = vpop.f32.mrb[0].mxu0
        %v1698 = vpop.f32.mrb[0].mxu0
        %v1699 = vpop.f32.mrb[0].mxu0
        %1700 = vdwg.mxu0
        %1701 = vmatprep.subr.bf16.mxu0 0
        %1702 = vmatpush1.bf16.msra.mxu0 %v1517
        %1703 = vmatprep.subr.bf16.mxu0 0
        %1704 = vmatpush1.bf16.msra.mxu0 %v1518
        %1705 = vmatprep.subr.bf16.mxu0 0
        %1706 = vmatpush1.bf16.msra.mxu0 %v1519
        %1707 = vmatprep.subr.bf16.mxu0 0
        %1708 = vmatpush1.bf16.msra.mxu0 %v1520
        %1709 = vmatprep.subr.bf16.mxu0 0
        %1710 = vmatpush1.bf16.msra.mxu0 %v1521
        %1711 = vmatprep.subr.bf16.mxu0 0
        %1712 = vmatpush1.bf16.msra.mxu0 %v1522
        %1713 = vmatprep.subr.bf16.mxu0 0
        %1714 = vmatpush1.bf16.msra.mxu0 %v1523
        %1715 = vmatprep.subr.bf16.mxu0 0
        %1716 = vmatpush1.bf16.msra.mxu0 %v1524
        %1717 = vmatprep.subr.bf16.mxu0 0
        %1718 = vmatpush1.bf16.msra.mxu0 %v1525
        %1719 = vmatprep.subr.bf16.mxu0 0
        %1720 = vmatpush1.bf16.msra.mxu0 %v1526
        %1721 = vmatprep.subr.bf16.mxu0 0
        %1722 = vmatpush1.bf16.msra.mxu0 %v1527
        %1723 = vmatprep.subr.bf16.mxu0 0
        %1724 = vmatpush1.bf16.msra.mxu0 %v1528
        %1725 = vmatprep.subr.bf16.mxu0 0
        %1726 = vmatpush1.bf16.msra.mxu0 %v1529
        %1727 = vmatprep.subr.bf16.mxu0 0
        %1728 = vmatpush1.bf16.msra.mxu0 %v1530
        %1729 = vmatprep.subr.bf16.mxu0 0
        %1730 = vmatpush1.bf16.msra.mxu0 %v1531
        %1731 = vmatprep.subr.bf16.mxu0 0
        %1732 = vmatpush1.bf16.msra.mxu0 %v1532
        %1733 = vmatprep.mubr.bf16.mxu0 %v1260
        %1734 = vmatmul.mubr.bf16.gmra.mrb[0].mxu0 %v1259
        %v1735 = vpop.f32.mrb[0].mxu0
        %v1736 = vadd.f32 %v1600, %v1735
        %v1737 = vpop.f32.mrb[0].mxu0
        %v1738 = vpop.f32.mrb[0].mxu0
        %v1739 = vadd.f32 %v1603, %v1738
        %v1740 = vpop.f32.mrb[0].mxu0
        %1741 = vmatprep.mubr.bf16.mxu0 %v1264
        %1742 = vmatmul.mubr.bf16.gmra.mrb[0].mxu0 %v1263
        %v1743 = vpop.f32.mrb[0].mxu0
        %v1744 = vadd.f32 %v1608, %v1743
        %v1745 = vpop.f32.mrb[0].mxu0
        %v1746 = vpop.f32.mrb[0].mxu0
        %v1747 = vadd.f32 %v1611, %v1746
        %v1748 = vpop.f32.mrb[0].mxu0
        %1749 = vmatprep.mubr.bf16.mxu0 %v1268
        %1750 = vmatmul.mubr.bf16.gmra.mrb[0].mxu0 %v1267
        %v1751 = vpop.f32.mrb[0].mxu0
        %v1752 = vadd.f32 %v1616, %v1751
        %v1753 = vpop.f32.mrb[0].mxu0
        %v1754 = vpop.f32.mrb[0].mxu0
        %v1755 = vadd.f32 %v1619, %v1754
        %v1756 = vpop.f32.mrb[0].mxu0
        %1757 = vmatprep.mubr.bf16.mxu0 %v1272
        %1758 = vmatmul.mubr.bf16.gmra.mrb[0].mxu0 %v1271
        %v1759 = vpop.f32.mrb[0].mxu0
        %v1760 = vadd.f32 %v1624, %v1759
        %v1761 = vpop.f32.mrb[0].mxu0
        %v1762 = vpop.f32.mrb[0].mxu0
        %v1763 = vadd.f32 %v1627, %v1762
        %v1764 = vpop.f32.mrb[0].mxu0
        %1765 = vmatprep.mubr.bf16.mxu0 %v1276
        %1766 = vmatmul.mubr.bf16.gmra.mrb[0].mxu0 %v1275
        %v1767 = vpop.f32.mrb[0].mxu0
        %v1768 = vadd.f32 %v1632, %v1767
        %v1769 = vpop.f32.mrb[0].mxu0
        %v1770 = vpop.f32.mrb[0].mxu0
        %v1771 = vadd.f32 %v1635, %v1770
        %v1772 = vpop.f32.mrb[0].mxu0
        %1773 = vmatprep.mubr.bf16.mxu0 %v1280
        %1774 = vmatmul.mubr.bf16.gmra.mrb[0].mxu0 %v1279
        %v1775 = vpop.f32.mrb[0].mxu0
        %v1776 = vadd.f32 %v1640, %v1775
        %v1777 = vpop.f32.mrb[0].mxu0
        %v1778 = vpop.f32.mrb[0].mxu0
        %v1779 = vadd.f32 %v1643, %v1778
        %v1780 = vpop.f32.mrb[0].mxu0
        %1781 = vmatprep.mubr.bf16.mxu0 %v1284
        %1782 = vmatmul.mubr.bf16.gmra.mrb[0].mxu0 %v1283
        %v1783 = vpop.f32.mrb[0].mxu0
        %v1784 = vadd.f32 %v1648, %v1783
        %v1785 = vpop.f32.mrb[0].mxu0
        %v1786 = vpop.f32.mrb[0].mxu0
        %v1787 = vadd.f32 %v1651, %v1786
        %v1788 = vpop.f32.mrb[0].mxu0
        %1789 = vmatprep.mubr.bf16.mxu0 %v1288
        %1790 = vmatmul.mubr.bf16.gmra.mrb[0].mxu0 %v1287
        %v1791 = vpop.f32.mrb[0].mxu0
        %v1792 = vadd.f32 %v1656, %v1791
        %v1793 = vpop.f32.mrb[0].mxu0
        %v1794 = vpop.f32.mrb[0].mxu0
        %v1795 = vadd.f32 %v1659, %v1794
        %v1796 = vpop.f32.mrb[0].mxu0
        %1797 = vmatprep.mubr.bf16.mxu0 %v1292
        %1798 = vmatmul.mubr.bf16.gmra.mrb[0].mxu0 %v1291
        %v1799 = vpop.f32.mrb[0].mxu0
        %v1800 = vadd.f32 %v1664, %v1799
        %v1801 = vpop.f32.mrb[0].mxu0
        %v1802 = vpop.f32.mrb[0].mxu0
        %v1803 = vadd.f32 %v1667, %v1802
        %v1804 = vpop.f32.mrb[0].mxu0
        %1805 = vmatprep.mubr.bf16.mxu0 %v1296
        %1806 = vmatmul.mubr.bf16.gmra.mrb[0].mxu0 %v1295
        %v1807 = vpop.f32.mrb[0].mxu0
        %v1808 = vadd.f32 %v1672, %v1807
        %v1809 = vpop.f32.mrb[0].mxu0
        %v1810 = vpop.f32.mrb[0].mxu0
        %v1811 = vadd.f32 %v1675, %v1810
        %v1812 = vpop.f32.mrb[0].mxu0
        %1813 = vmatprep.mubr.bf16.mxu0 %v1300
        %1814 = vmatmul.mubr.bf16.gmra.mrb[0].mxu0 %v1299
        %v1815 = vpop.f32.mrb[0].mxu0
        %v1816 = vadd.f32 %v1680, %v1815
        %v1817 = vpop.f32.mrb[0].mxu0
        %v1818 = vpop.f32.mrb[0].mxu0
        %v1819 = vadd.f32 %v1683, %v1818
        %v1820 = vpop.f32.mrb[0].mxu0
        %1821 = vmatprep.mubr.bf16.mxu0 %v1304
        %1822 = vmatmul.mubr.bf16.gmra.mrb[0].mxu0 %v1303
        %v1823 = vpop.f32.mrb[0].mxu0
        %v1824 = vadd.f32 %v1688, %v1823
        %v1825 = vpop.f32.mrb[0].mxu0
        %v1826 = vpop.f32.mrb[0].mxu0
        %v1827 = vadd.f32 %v1691, %v1826
        %v1828 = vpop.f32.mrb[0].mxu0
        %1829 = vmatprep.mubr.bf16.mxu0 %v1308
        %1830 = vmatmul.mubr.bf16.gmra.mrb[0].mxu0 %v1307
        %v1831 = vpop.f32.mrb[0].mxu0
        %v1832 = vadd.f32 %v1696, %v1831
        %v1833 = vpop.f32.mrb[0].mxu0
        %v1834 = vpop.f32.mrb[0].mxu0
        %v1835 = vpop.f32.mrb[0].mxu0
        %1836 = vdwg.mxu0
        %p1837 = scmp.eq.s32.totalorder %s29, 0
        // Predicated region
        $region57: #{tpu_custom_call.1} parent=39 // pred_check
          %p1838 = pneg %p1837
        $region58: #{tpu_custom_call.1} parent=39 // pred_check_branch
          %1840 = sbr.rel (%p1838) target = $region60
        $region59: #{tpu_custom_call.1} parent=39 // pred_region
          %v1841 = vld [vmem:[%s4] sm:$0x1]
          %v1843 = vlaneseq
          %v1844 = vshrl.u32 %v1843, 7
          %v1845 = vsub.s32 0, %v1844
          %v1846 = vrot.slane %v1841, %v1845
          %v1848 = vadd.f32 %v1736, %v1846
          %v1849 = vadd.f32 %v1739, %v1846
          %v1850 = vadd.f32 %v1744, %v1846
          %v1851 = vadd.f32 %v1747, %v1846
          %v1852 = vadd.f32 %v1752, %v1846
          %v1853 = vadd.f32 %v1755, %v1846
          %v1854 = vadd.f32 %v1760, %v1846
          %v1855 = vadd.f32 %v1763, %v1846
          %v1856 = vadd.f32 %v1768, %v1846
          %v1857 = vadd.f32 %v1771, %v1846
          %v1858 = vadd.f32 %v1776, %v1846
          %v1859 = vadd.f32 %v1779, %v1846
          %v1860 = vadd.f32 %v1784, %v1846
          %v1861 = vadd.f32 %v1787, %v1846
          %v1862 = vadd.f32 %v1792, %v1846
          %v1863 = vadd.f32 %v1795, %v1846
          %v1864 = vadd.f32 %v1800, %v1846
          %v1865 = vadd.f32 %v1803, %v1846
          %v1866 = vadd.f32 %v1808, %v1846
          %v1867 = vadd.f32 %v1811, %v1846
          %v1868 = vadd.f32 %v1816, %v1846
          %v1869 = vadd.f32 %v1819, %v1846
          %v1870 = vadd.f32 %v1824, %v1846
          %v1871 = vadd.f32 %v1827, %v1846
          %v1872 = vadd.f32 %v1832, %v1846
          %1873 = vst [vmem:[#allocation10] sm:$0xff] %v1848
          %1874 = vst [vmem:[#allocation10 + $0x8] sm:$0xff] %v1849
          %1875 = vst [vmem:[#allocation10 + $0x10] sm:$0xff] %v1850
          %1876 = vst [vmem:[#allocation10 + $0x18] sm:$0xff] %v1851
          %1877 = vst [vmem:[#allocation10 + $0x20] sm:$0xff] %v1852
          %1878 = vst [vmem:[#allocation10 + $0x28] sm:$0xff] %v1853
          %1879 = vst [vmem:[#allocation10 + $0x30] sm:$0xff] %v1854
          %1880 = vst [vmem:[#allocation10 + $0x38] sm:$0xff] %v1855
          %1881 = vst [vmem:[#allocation10 + $0x40] sm:$0xff] %v1856
          %1882 = vst [vmem:[#allocation10 + $0x48] sm:$0xff] %v1857
          %1883 = vst [vmem:[#allocation10 + $0x50] sm:$0xff] %v1858
          %1884 = vst [vmem:[#allocation10 + $0x58] sm:$0xff] %v1859
          %1885 = vst [vmem:[#allocation10 + $0x60] sm:$0xff] %v1860
          %1886 = vst [vmem:[#allocation10 + $0x68] sm:$0xff] %v1861
          %1887 = vst [vmem:[#allocation10 + $0x70] sm:$0xff] %v1862
          %1888 = vst [vmem:[#allocation10 + $0x78] sm:$0xff] %v1863
          %1889 = vst [vmem:[#allocation10 + $0x80] sm:$0xff] %v1864
          %1890 = vst [vmem:[#allocation10 + $0x88] sm:$0xff] %v1865
          %1891 = vst [vmem:[#allocation10 + $0x90] sm:$0xff] %v1866
          %1892 = vst [vmem:[#allocation10 + $0x98] sm:$0xff] %v1867
          %1893 = vst [vmem:[#allocation10 + $0xa0] sm:$0xff] %v1868
          %1894 = vst [vmem:[#allocation10 + $0xa8] sm:$0xff] %v1869
          %1895 = vst [vmem:[#allocation10 + $0xb0] sm:$0xff] %v1870
          %1896 = vst [vmem:[#allocation10 + $0xb8] sm:$0xff] %v1871
          %1897 = vst [vmem:[#allocation10 + $0xc0] sm:$0xff] %v1872
        $region60: #{tpu_custom_call.1} parent=39 // pred_fallthru
          _
        %p1898 = scmp.ne.s32.totalorder %s29, 0
        // Predicated region
        $region61: #{tpu_custom_call.1} parent=39 // pred_check
          %p1899 = pneg %p1898
        $region62: #{tpu_custom_call.1} parent=39 // pred_check_branch
          %1901 = sbr.rel (%p1899) target = $region64
        $region63: #{tpu_custom_call.1} parent=39 // pred_region
          %v1902 = vld [vmem:[#allocation10] sm:$0xff]
          %v1903 = vld [vmem:[#allocation10 + $0x8] sm:$0xff]
          %v1904 = vld [vmem:[#allocation10 + $0x10] sm:$0xff]
          %v1905 = vld [vmem:[#allocation10 + $0x18] sm:$0xff]
          %v1906 = vld [vmem:[#allocation10 + $0x20] sm:$0xff]
          %v1907 = vld [vmem:[#allocation10 + $0x28] sm:$0xff]
          %v1908 = vld [vmem:[#allocation10 + $0x30] sm:$0xff]
          %v1909 = vld [vmem:[#allocation10 + $0x38] sm:$0xff]
          %v1910 = vld [vmem:[#allocation10 + $0x40] sm:$0xff]
          %v1911 = vld [vmem:[#allocation10 + $0x48] sm:$0xff]
          %v1912 = vld [vmem:[#allocation10 + $0x50] sm:$0xff]
          %v1913 = vld [vmem:[#allocation10 + $0x58] sm:$0xff]
          %v1914 = vld [vmem:[#allocation10 + $0x60] sm:$0xff]
          %v1915 = vld [vmem:[#allocation10 + $0x68] sm:$0xff]
          %v1916 = vld [vmem:[#allocation10 + $0x70] sm:$0xff]
          %v1917 = vld [vmem:[#allocation10 + $0x78] sm:$0xff]
          %v1918 = vld [vmem:[#allocation10 + $0x80] sm:$0xff]
          %v1919 = vld [vmem:[#allocation10 + $0x88] sm:$0xff]
          %v1920 = vld [vmem:[#allocation10 + $0x90] sm:$0xff]
          %v1921 = vld [vmem:[#allocation10 + $0x98] sm:$0xff]
          %v1922 = vld [vmem:[#allocation10 + $0xa0] sm:$0xff]
          %v1923 = vld [vmem:[#allocation10 + $0xa8] sm:$0xff]
          %v1924 = vld [vmem:[#allocation10 + $0xb0] sm:$0xff]
          %v1925 = vld [vmem:[#allocation10 + $0xb8] sm:$0xff]
          %v1926 = vld [vmem:[#allocation10 + $0xc0] sm:$0xff]
          %v1927 = vadd.f32 %v1902, %v1736
          %v1928 = vadd.f32 %v1903, %v1739
          %v1929 = vadd.f32 %v1904, %v1744
          %v1930 = vadd.f32 %v1905, %v1747
          %v1931 = vadd.f32 %v1906, %v1752
          %v1932 = vadd.f32 %v1907, %v1755
          %v1933 = vadd.f32 %v1908, %v1760
          %v1934 = vadd.f32 %v1909, %v1763
          %v1935 = vadd.f32 %v1910, %v1768
          %v1936 = vadd.f32 %v1911, %v1771
          %v1937 = vadd.f32 %v1912, %v1776
          %v1938 = vadd.f32 %v1913, %v1779
          %v1939 = vadd.f32 %v1914, %v1784
          %v1940 = vadd.f32 %v1915, %v1787
          %v1941 = vadd.f32 %v1916, %v1792
          %v1942 = vadd.f32 %v1917, %v1795
          %v1943 = vadd.f32 %v1918, %v1800
          %v1944 = vadd.f32 %v1919, %v1803
          %v1945 = vadd.f32 %v1920, %v1808
          %v1946 = vadd.f32 %v1921, %v1811
          %v1947 = vadd.f32 %v1922, %v1816
          %v1948 = vadd.f32 %v1923, %v1819
          %v1949 = vadd.f32 %v1924, %v1824
          %v1950 = vadd.f32 %v1925, %v1827
          %v1951 = vadd.f32 %v1926, %v1832
          %1952 = vst [vmem:[#allocation10] sm:$0xff] %v1927
          %1953 = vst [vmem:[#allocation10 + $0x8] sm:$0xff] %v1928
          %1954 = vst [vmem:[#allocation10 + $0x10] sm:$0xff] %v1929
          %1955 = vst [vmem:[#allocation10 + $0x18] sm:$0xff] %v1930
          %1956 = vst [vmem:[#allocation10 + $0x20] sm:$0xff] %v1931
          %1957 = vst [vmem:[#allocation10 + $0x28] sm:$0xff] %v1932
          %1958 = vst [vmem:[#allocation10 + $0x30] sm:$0xff] %v1933
          %1959 = vst [vmem:[#allocation10 + $0x38] sm:$0xff] %v1934
          %1960 = vst [vmem:[#allocation10 + $0x40] sm:$0xff] %v1935
          %1961 = vst [vmem:[#allocation10 + $0x48] sm:$0xff] %v1936
          %1962 = vst [vmem:[#allocation10 + $0x50] sm:$0xff] %v1937
          %1963 = vst [vmem:[#allocation10 + $0x58] sm:$0xff] %v1938
          %1964 = vst [vmem:[#allocation10 + $0x60] sm:$0xff] %v1939
          %1965 = vst [vmem:[#allocation10 + $0x68] sm:$0xff] %v1940
          %1966 = vst [vmem:[#allocation10 + $0x70] sm:$0xff] %v1941
          %1967 = vst [vmem:[#allocation10 + $0x78] sm:$0xff] %v1942
          %1968 = vst [vmem:[#allocation10 + $0x80] sm:$0xff] %v1943
          %1969 = vst [vmem:[#allocation10 + $0x88] sm:$0xff] %v1944
          %1970 = vst [vmem:[#allocation10 + $0x90] sm:$0xff] %v1945
          %1971 = vst [vmem:[#allocation10 + $0x98] sm:$0xff] %v1946
          %1972 = vst [vmem:[#allocation10 + $0xa0] sm:$0xff] %v1947
          %1973 = vst [vmem:[#allocation10 + $0xa8] sm:$0xff] %v1948
          %1974 = vst [vmem:[#allocation10 + $0xb0] sm:$0xff] %v1949
          %1975 = vst [vmem:[#allocation10 + $0xb8] sm:$0xff] %v1950
          %1976 = vst [vmem:[#allocation10 + $0xc0] sm:$0xff] %v1951
        $region64: #{tpu_custom_call.1} parent=39 // pred_fallthru
          _
        // Predicated region
        $region65: #{tpu_custom_call.1} parent=39 // pred_check
          %p1977 = pneg %p179
        $region66: #{tpu_custom_call.1} parent=39 // pred_check_branch
          %1979 = sbr.rel (%p1977) target = $region68
        $region67: #{tpu_custom_call.1} parent=39 // pred_region
          %s1980 = smul.u32 25, %s28
          %s1982 = ssub.s32 3200, 3200
          %1983 = vsyncadd [#allocation4], %s1982
          %s1984 = smul.addr %s1980, 128
          %s1985 = scalar_lea.hbm %s5, %s1984
          %s1986 = sshll.u32 [#allocation10], 4
          %s1987 = int_to_ptr.vmem [resolvable:$true] %s1986
          %1992 = dma.vmem_to_hbm [thread:$0]  %s1987, 3200, %s1985, [#allocation4], 128, 128, 8
        $region68: #{tpu_custom_call.1} parent=39 // pred_fallthru
          _
        // Predicated region
        $region69: #{tpu_custom_call.1} parent=39 // pred_check
          %p1993 = pneg %p179
        $region70: #{tpu_custom_call.1} parent=39 // pred_check_branch
          %1995 = sbr.rel (%p1993) target = $region72
        $region71: #{tpu_custom_call.1} parent=39 // pred_region
          %1996 = dma.done [#allocation4], 3200
        $region72: #{tpu_custom_call.1} parent=39 // pred_fallthru
          _
      $region40: #{tpu_custom_call.1} parent=5 // pred_fallthru
        _
      %p1997 = scmp.le.s32.totalorder 2, %s19
      // Predicated region
      $region73: #{tpu_custom_call.1} parent=5 // pred_check
        %p1998 = pneg %p1997
      $region74: #{tpu_custom_call.1} parent=5 // pred_check_branch
        %2000 = sbr.rel (%p1998) target = $region76
      $region75: #{tpu_custom_call.1} parent=5 // pred_region
        %s2001 = ssub.s32 %s19, 2
      $region76: #{tpu_custom_call.1} parent=5 // pred_fallthru
        _
    $region6: #{tpu_custom_call.1} parent=1 // loop_footer
      %s23 = sadd.s32 1, %s19
    $region7: #{tpu_custom_call.1} parent=1 // loop_footer_branch
      %18 = sbr.rel target = $region3
    $region8: #{tpu_custom_call.1} parent=1 // loop_exit
      _
    %2002 = vsyncpa [#allocation3], 1
    %s2003 = scalar_lea.sflag [#allocation3], 1
    %2004 = vsyncpa %s2003, 1
    %2005 = vsyncpa [#allocation6], 1
    %s2006 = scalar_lea.sflag [#allocation6], 1
    %2007 = vsyncpa %s2006, 1
    %2008 = vsyncpa [#allocation9], 1
    %s2009 = scalar_lea.sflag [#allocation9], 1
    %2010 = vsyncpa %s2009, 1
    %2011 = vsyncpa [#allocation4], 1
    %s2012 = scalar_lea.sflag [#allocation4], 1
    %2013 = vsyncpa %s2012, 1

</llo_original>
